<compile_context>
chip_gen: v5e
topology: v5e:2x2
jax: 0.10.0
libtpu: 0.0.40
codegen_flags: <defaults>
</compile_context>

<pallas_src>
import jax
import jax.numpy as jnp
import numpy as np
from jax.experimental import pallas as pl
from jax.experimental.pallas import tpu as pltpu


def graph_unpool(A, X, idx):
    """Pallas equivalent of GraphUnpool.forward(A, X, idx) -> (A, new_X)."""
    N = A.shape[0]
    k, F = X.shape
    # Clamp so a malformed index cannot drive the scatter DMA out of bounds.
    idx = jnp.clip(idx.astype(jnp.int32).reshape(k), 0, N - 1)

    # Rows per grid step: big enough to amortize per-step overhead, multiple
    # of 8 so the (R, F) input block satisfies the sublane constraint.
    R = min(256, 8 * pl.cdiv(k, 8))
    k_pad = R * pl.cdiv(k, R)

    if k_pad != k:
        pad = k_pad - k
        # Edge-replicate: padded rows rewrite the same (row, data) pair, so
        # they are harmless no-ops regardless of write ordering.
        Xp = jnp.concatenate([X, jnp.broadcast_to(X[-1:], (pad, F))], axis=0)
        idxp = jnp.concatenate([idx, jnp.broadcast_to(idx[-1:], (pad,))], axis=0)
    else:
        Xp, idxp = X, idx

    # Pre-zeroed destination, aliased to the kernel output (P8 pattern): the
    # kernel only writes the k targeted rows; everything else stays zero.
    init = jnp.zeros((N, F), dtype=X.dtype)
    itemsize = jnp.dtype(X.dtype).itemsize

    def kernel(idx_ref, x_ref, init_ref, o_hbm, sems):
        # idx_ref:  (k_pad,) int32 scalar-prefetch ref (SMEM).
        # x_ref:    (R, F) tile of pooled-node features (VMEM, auto-pipelined).
        # init_ref: (N, F) pre-zeroed buffer aliased to the output; untouched.
        # o_hbm:    (N, F) raw output ref (same buffer as init_ref).
        # sems:     (R,) DMA semaphores.
        del init_ref
        base = pl.program_id(0) * R
        copies = []
        for r in range(R):  # static unroll: R row-scatter DMAs in flight
            row = idx_ref[base + r]
            cp = pltpu.make_async_copy(
                x_ref.at[pl.ds(r, 1), :],
                o_hbm.at[pl.ds(row, 1), :],
                sems.at[r],
            )
            cp.start()
            copies.append(cp)
        for cp in copies:
            cp.wait()

    new_X = pl.pallas_call(
        kernel,
        out_shape=jax.ShapeDtypeStruct((N, F), X.dtype),
        grid_spec=pltpu.PrefetchScalarGridSpec(
            num_scalar_prefetch=1,            # idx -> SMEM
            grid=(k_pad // R,),
            in_specs=[
                pl.BlockSpec((R, F), lambda j, idx_ref: (j, 0)),
                pl.BlockSpec(memory_space=pl.ANY),   # aliased zero background
            ],
            out_specs=pl.BlockSpec(memory_space=pl.ANY),  # scattered via DMA
            scratch_shapes=[pltpu.SemaphoreType.DMA((R,))],
        ),
        # Flat input order is (idx, Xp, init) -> alias init to output 0.
        input_output_aliases={2: 0},
        compiler_params=pltpu.CompilerParams(
            # idx is unique (top-k pooling), so grid steps write disjoint rows
            # -> safe to shard across v7x's two TensorCores.
            dimension_semantics=("parallel",)),
        cost_estimate=pl.CostEstimate(
            flops=0, transcendentals=0,
            bytes_accessed=(k_pad + N) * F * itemsize),
    )(idxp, Xp, init)

    # A passes through unchanged, exactly like the PyTorch module.
    return A, new_X


if __name__ == "__main__":
    key = jax.random.PRNGKey(0)
    k_a, k_x, k_idx = jax.random.split(key, 3)

    unpool = jax.jit(graph_unpool)

    # Case 1: lane-aligned features, k a multiple of 8.
    N, k, F = 64, 16, 128
    A = jax.random.normal(k_a, (N, N), dtype=jnp.float32)
    X = jax.random.normal(k_x, (k, F), dtype=jnp.float32)
    idx = jnp.sort(jax.random.permutation(k_idx, N)[:k]).astype(jnp.int32)

    A_out, new_X = unpool(A, X, idx)
    jax.block_until_ready((A_out, new_X))

    ref = jnp.zeros((N, F), dtype=X.dtype).at[idx].set(X)
    np.testing.assert_array_equal(np.asarray(new_X), np.asarray(ref))
    np.testing.assert_array_equal(np.asarray(A_out), np.asarray(A))

    # Case 2: F not a multiple of 128 and k not a multiple of 8 (exercises the
    # unpadded-output path and the edge-replicated row padding).
    N2, k2, F2 = 50, 7, 96
    A2 = jax.random.normal(k_a, (N2, N2), dtype=jnp.float32)
    X2 = jax.random.normal(k_x, (k2, F2), dtype=jnp.float32)
    idx2 = jnp.sort(jax.random.permutation(k_idx, N2)[:k2]).astype(jnp.int32)

    A2_out, new_X2 = unpool(A2, X2, idx2)
    jax.block_until_ready((A2_out, new_X2))

    ref2 = jnp.zeros((N2, F2), dtype=X2.dtype).at[idx2].set(X2)
    np.testing.assert_array_equal(np.asarray(new_X2), np.asarray(ref2))
    np.testing.assert_array_equal(np.asarray(A2_out), np.asarray(A2))

    print("KERNEL_OK")
</pallas_src>

<mosaic_0001>
module attributes {stable_mosaic.version = 11 : i64} {
  func.func @kernel(%arg0: i32, %arg1: memref<16xi32, #tpu.memory_space<smem>>, %arg2: memref<16x128xf32, #tpu.memory_space<vmem>>, %arg3: memref<64x128xf32, #tpu.memory_space<any>>, %arg4: memref<64x128xf32, #tpu.memory_space<any>>, %arg5: memref<16x!tpu.dma_semaphore, #tpu.memory_space<semaphore_mem>>) attributes {dimension_semantics = [#tpu.dimension_semantics<parallel>], iteration_bounds = array<i64: 1>, scalar_prefetch = 1 : i64, scratch_operands = 1 : i64, tpu.core_type = #tpu.core_type<tc>, window_params = [{transform_indices = @transform_0, window_bounds = array<i64: 16, 128>}, {}, {}]} {
    %c16_i32 = arith.constant 16 : i32
    %0 = arith.muli %arg0, %c16_i32 : i32
    %c0_i32 = arith.constant 0 : i32
    %1 = arith.addi %0, %c0_i32 : i32
    %2 = arith.index_cast %1 : i32 to index
    %3 = memref.load %arg1[%2] : memref<16xi32, #tpu.memory_space<smem>>
    %c0_i32_0 = arith.constant 0 : i32
    %c0_i32_1 = arith.constant 0 : i32
    %c0_i32_2 = arith.constant 0 : i32
    %4 = tpu.memref_slice %arg2[%c0_i32_1, %c0_i32_2] : memref<16x128xf32, #tpu.memory_space<vmem>> -> memref<1x128xf32, #tpu.memory_space<vmem>>
    %c0_i32_3 = arith.constant 0 : i32
    %5 = tpu.memref_slice %arg4[%3, %c0_i32_3] : memref<64x128xf32, #tpu.memory_space<any>> -> memref<1x128xf32, #tpu.memory_space<any>>
    %6 = tpu.memref_slice %arg5[%c0_i32_0] : memref<16x!tpu.dma_semaphore, #tpu.memory_space<semaphore_mem>> -> memref<1x!tpu.dma_semaphore, #tpu.memory_space<semaphore_mem>>
    %7 = tpu.memref_squeeze %6 : memref<1x!tpu.dma_semaphore, #tpu.memory_space<semaphore_mem>> -> memref<!tpu.dma_semaphore, #tpu.memory_space<semaphore_mem>>
    tpu.enqueue_dma source(%4 : memref<1x128xf32, #tpu.memory_space<vmem>>) target(%5 : memref<1x128xf32, #tpu.memory_space<any>>) target_semaphore(%7 : memref<!tpu.dma_semaphore, #tpu.memory_space<semaphore_mem>>)
    %c1_i32 = arith.constant 1 : i32
    %8 = arith.addi %0, %c1_i32 : i32
    %9 = arith.index_cast %8 : i32 to index
    %10 = memref.load %arg1[%9] : memref<16xi32, #tpu.memory_space<smem>>
    %c1_i32_4 = arith.constant 1 : i32
    %c1_i32_5 = arith.constant 1 : i32
    %c0_i32_6 = arith.constant 0 : i32
    %11 = tpu.memref_slice %arg2[%c1_i32_5, %c0_i32_6] : memref<16x128xf32, #tpu.memory_space<vmem>> -> memref<1x128xf32, #tpu.memory_space<vmem>>
    %c0_i32_7 = arith.constant 0 : i32
    %12 = tpu.memref_slice %arg4[%10, %c0_i32_7] : memref<64x128xf32, #tpu.memory_space<any>> -> memref<1x128xf32, #tpu.memory_space<any>>
    %13 = tpu.memref_slice %arg5[%c1_i32_4] : memref<16x!tpu.dma_semaphore, #tpu.memory_space<semaphore_mem>> -> memref<1x!tpu.dma_semaphore, #tpu.memory_space<semaphore_mem>>
    %14 = tpu.memref_squeeze %13 : memref<1x!tpu.dma_semaphore, #tpu.memory_space<semaphore_mem>> -> memref<!tpu.dma_semaphore, #tpu.memory_space<semaphore_mem>>
    tpu.enqueue_dma source(%11 : memref<1x128xf32, #tpu.memory_space<vmem>>) target(%12 : memref<1x128xf32, #tpu.memory_space<any>>) target_semaphore(%14 : memref<!tpu.dma_semaphore, #tpu.memory_space<semaphore_mem>>)
    %c2_i32 = arith.constant 2 : i32
    %15 = arith.addi %0, %c2_i32 : i32
    %16 = arith.index_cast %15 : i32 to index
    %17 = memref.load %arg1[%16] : memref<16xi32, #tpu.memory_space<smem>>
    %c2_i32_8 = arith.constant 2 : i32
    %c2_i32_9 = arith.constant 2 : i32
    %c0_i32_10 = arith.constant 0 : i32
    %18 = tpu.memref_slice %arg2[%c2_i32_9, %c0_i32_10] : memref<16x128xf32, #tpu.memory_space<vmem>> -> memref<1x128xf32, #tpu.memory_space<vmem>>
    %c0_i32_11 = arith.constant 0 : i32
    %19 = tpu.memref_slice %arg4[%17, %c0_i32_11] : memref<64x128xf32, #tpu.memory_space<any>> -> memref<1x128xf32, #tpu.memory_space<any>>
    %20 = tpu.memref_slice %arg5[%c2_i32_8] : memref<16x!tpu.dma_semaphore, #tpu.memory_space<semaphore_mem>> -> memref<1x!tpu.dma_semaphore, #tpu.memory_space<semaphore_mem>>
    %21 = tpu.memref_squeeze %20 : memref<1x!tpu.dma_semaphore, #tpu.memory_space<semaphore_mem>> -> memref<!tpu.dma_semaphore, #tpu.memory_space<semaphore_mem>>
    tpu.enqueue_dma source(%18 : memref<1x128xf32, #tpu.memory_space<vmem>>) target(%19 : memref<1x128xf32, #tpu.memory_space<any>>) target_semaphore(%21 : memref<!tpu.dma_semaphore, #tpu.memory_space<semaphore_mem>>)
    %c3_i32 = arith.constant 3 : i32
    %22 = arith.addi %0, %c3_i32 : i32
    %23 = arith.index_cast %22 : i32 to index
    %24 = memref.load %arg1[%23] : memref<16xi32, #tpu.memory_space<smem>>
    %c3_i32_12 = arith.constant 3 : i32
    %c3_i32_13 = arith.constant 3 : i32
    %c0_i32_14 = arith.constant 0 : i32
    %25 = tpu.memref_slice %arg2[%c3_i32_13, %c0_i32_14] : memref<16x128xf32, #tpu.memory_space<vmem>> -> memref<1x128xf32, #tpu.memory_space<vmem>>
    %c0_i32_15 = arith.constant 0 : i32
    %26 = tpu.memref_slice %arg4[%24, %c0_i32_15] : memref<64x128xf32, #tpu.memory_space<any>> -> memref<1x128xf32, #tpu.memory_space<any>>
    %27 = tpu.memref_slice %arg5[%c3_i32_12] : memref<16x!tpu.dma_semaphore, #tpu.memory_space<semaphore_mem>> -> memref<1x!tpu.dma_semaphore, #tpu.memory_space<semaphore_mem>>
    %28 = tpu.memref_squeeze %27 : memref<1x!tpu.dma_semaphore, #tpu.memory_space<semaphore_mem>> -> memref<!tpu.dma_semaphore, #tpu.memory_space<semaphore_mem>>
    tpu.enqueue_dma source(%25 : memref<1x128xf32, #tpu.memory_space<vmem>>) target(%26 : memref<1x128xf32, #tpu.memory_space<any>>) target_semaphore(%28 : memref<!tpu.dma_semaphore, #tpu.memory_space<semaphore_mem>>)
    %c4_i32 = arith.constant 4 : i32
    %29 = arith.addi %0, %c4_i32 : i32
    %30 = arith.index_cast %29 : i32 to index
    %31 = memref.load %arg1[%30] : memref<16xi32, #tpu.memory_space<smem>>
    %c4_i32_16 = arith.constant 4 : i32
    %c4_i32_17 = arith.constant 4 : i32
    %c0_i32_18 = arith.constant 0 : i32
    %32 = tpu.memref_slice %arg2[%c4_i32_17, %c0_i32_18] : memref<16x128xf32, #tpu.memory_space<vmem>> -> memref<1x128xf32, #tpu.memory_space<vmem>>
    %c0_i32_19 = arith.constant 0 : i32
    %33 = tpu.memref_slice %arg4[%31, %c0_i32_19] : memref<64x128xf32, #tpu.memory_space<any>> -> memref<1x128xf32, #tpu.memory_space<any>>
    %34 = tpu.memref_slice %arg5[%c4_i32_16] : memref<16x!tpu.dma_semaphore, #tpu.memory_space<semaphore_mem>> -> memref<1x!tpu.dma_semaphore, #tpu.memory_space<semaphore_mem>>
    %35 = tpu.memref_squeeze %34 : memref<1x!tpu.dma_semaphore, #tpu.memory_space<semaphore_mem>> -> memref<!tpu.dma_semaphore, #tpu.memory_space<semaphore_mem>>
    tpu.enqueue_dma source(%32 : memref<1x128xf32, #tpu.memory_space<vmem>>) target(%33 : memref<1x128xf32, #tpu.memory_space<any>>) target_semaphore(%35 : memref<!tpu.dma_semaphore, #tpu.memory_space<semaphore_mem>>)
    %c5_i32 = arith.constant 5 : i32
    %36 = arith.addi %0, %c5_i32 : i32
    %37 = arith.index_cast %36 : i32 to index
    %38 = memref.load %arg1[%37] : memref<16xi32, #tpu.memory_space<smem>>
    %c5_i32_20 = arith.constant 5 : i32
    %c5_i32_21 = arith.constant 5 : i32
    %c0_i32_22 = arith.constant 0 : i32
    %39 = tpu.memref_slice %arg2[%c5_i32_21, %c0_i32_22] : memref<16x128xf32, #tpu.memory_space<vmem>> -> memref<1x128xf32, #tpu.memory_space<vmem>>
    %c0_i32_23 = arith.constant 0 : i32
    %40 = tpu.memref_slice %arg4[%38, %c0_i32_23] : memref<64x128xf32, #tpu.memory_space<any>> -> memref<1x128xf32, #tpu.memory_space<any>>
    %41 = tpu.memref_slice %arg5[%c5_i32_20] : memref<16x!tpu.dma_semaphore, #tpu.memory_space<semaphore_mem>> -> memref<1x!tpu.dma_semaphore, #tpu.memory_space<semaphore_mem>>
    %42 = tpu.memref_squeeze %41 : memref<1x!tpu.dma_semaphore, #tpu.memory_space<semaphore_mem>> -> memref<!tpu.dma_semaphore, #tpu.memory_space<semaphore_mem>>
    tpu.enqueue_dma source(%39 : memref<1x128xf32, #tpu.memory_space<vmem>>) target(%40 : memref<1x128xf32, #tpu.memory_space<any>>) target_semaphore(%42 : memref<!tpu.dma_semaphore, #tpu.memory_space<semaphore_mem>>)
    %c6_i32 = arith.constant 6 : i32
    %43 = arith.addi %0, %c6_i32 : i32
    %44 = arith.index_cast %43 : i32 to index
    %45 = memref.load %arg1[%44] : memref<16xi32, #tpu.memory_space<smem>>
    %c6_i32_24 = arith.constant 6 : i32
    %c6_i32_25 = arith.constant 6 : i32
    %c0_i32_26 = arith.constant 0 : i32
    %46 = tpu.memref_slice %arg2[%c6_i32_25, %c0_i32_26] : memref<16x128xf32, #tpu.memory_space<vmem>> -> memref<1x128xf32, #tpu.memory_space<vmem>>
    %c0_i32_27 = arith.constant 0 : i32
    %47 = tpu.memref_slice %arg4[%45, %c0_i32_27] : memref<64x128xf32, #tpu.memory_space<any>> -> memref<1x128xf32, #tpu.memory_space<any>>
    %48 = tpu.memref_slice %arg5[%c6_i32_24] : memref<16x!tpu.dma_semaphore, #tpu.memory_space<semaphore_mem>> -> memref<1x!tpu.dma_semaphore, #tpu.memory_space<semaphore_mem>>
    %49 = tpu.memref_squeeze %48 : memref<1x!tpu.dma_semaphore, #tpu.memory_space<semaphore_mem>> -> memref<!tpu.dma_semaphore, #tpu.memory_space<semaphore_mem>>
    tpu.enqueue_dma source(%46 : memref<1x128xf32, #tpu.memory_space<vmem>>) target(%47 : memref<1x128xf32, #tpu.memory_space<any>>) target_semaphore(%49 : memref<!tpu.dma_semaphore, #tpu.memory_space<semaphore_mem>>)
    %c7_i32 = arith.constant 7 : i32
    %50 = arith.addi %0, %c7_i32 : i32
    %51 = arith.index_cast %50 : i32 to index
    %52 = memref.load %arg1[%51] : memref<16xi32, #tpu.memory_space<smem>>
    %c7_i32_28 = arith.constant 7 : i32
    %c7_i32_29 = arith.constant 7 : i32
    %c0_i32_30 = arith.constant 0 : i32
    %53 = tpu.memref_slice %arg2[%c7_i32_29, %c0_i32_30] : memref<16x128xf32, #tpu.memory_space<vmem>> -> memref<1x128xf32, #tpu.memory_space<vmem>>
    %c0_i32_31 = arith.constant 0 : i32
    %54 = tpu.memref_slice %arg4[%52, %c0_i32_31] : memref<64x128xf32, #tpu.memory_space<any>> -> memref<1x128xf32, #tpu.memory_space<any>>
    %55 = tpu.memref_slice %arg5[%c7_i32_28] : memref<16x!tpu.dma_semaphore, #tpu.memory_space<semaphore_mem>> -> memref<1x!tpu.dma_semaphore, #tpu.memory_space<semaphore_mem>>
    %56 = tpu.memref_squeeze %55 : memref<1x!tpu.dma_semaphore, #tpu.memory_space<semaphore_mem>> -> memref<!tpu.dma_semaphore, #tpu.memory_space<semaphore_mem>>
    tpu.enqueue_dma source(%53 : memref<1x128xf32, #tpu.memory_space<vmem>>) target(%54 : memref<1x128xf32, #tpu.memory_space<any>>) target_semaphore(%56 : memref<!tpu.dma_semaphore, #tpu.memory_space<semaphore_mem>>)
    %c8_i32 = arith.constant 8 : i32
    %57 = arith.addi %0, %c8_i32 : i32
    %58 = arith.index_cast %57 : i32 to index
    %59 = memref.load %arg1[%58] : memref<16xi32, #tpu.memory_space<smem>>
    %c8_i32_32 = arith.constant 8 : i32
    %c8_i32_33 = arith.constant 8 : i32
    %c0_i32_34 = arith.constant 0 : i32
    %60 = tpu.memref_slice %arg2[%c8_i32_33, %c0_i32_34] : memref<16x128xf32, #tpu.memory_space<vmem>> -> memref<1x128xf32, #tpu.memory_space<vmem>>
    %c0_i32_35 = arith.constant 0 : i32
    %61 = tpu.memref_slice %arg4[%59, %c0_i32_35] : memref<64x128xf32, #tpu.memory_space<any>> -> memref<1x128xf32, #tpu.memory_space<any>>
    %62 = tpu.memref_slice %arg5[%c8_i32_32] : memref<16x!tpu.dma_semaphore, #tpu.memory_space<semaphore_mem>> -> memref<1x!tpu.dma_semaphore, #tpu.memory_space<semaphore_mem>>
    %63 = tpu.memref_squeeze %62 : memref<1x!tpu.dma_semaphore, #tpu.memory_space<semaphore_mem>> -> memref<!tpu.dma_semaphore, #tpu.memory_space<semaphore_mem>>
    tpu.enqueue_dma source(%60 : memref<1x128xf32, #tpu.memory_space<vmem>>) target(%61 : memref<1x128xf32, #tpu.memory_space<any>>) target_semaphore(%63 : memref<!tpu.dma_semaphore, #tpu.memory_space<semaphore_mem>>)
    %c9_i32 = arith.constant 9 : i32
    %64 = arith.addi %0, %c9_i32 : i32
    %65 = arith.index_cast %64 : i32 to index
    %66 = memref.load %arg1[%65] : memref<16xi32, #tpu.memory_space<smem>>
    %c9_i32_36 = arith.constant 9 : i32
    %c9_i32_37 = arith.constant 9 : i32
    %c0_i32_38 = arith.constant 0 : i32
    %67 = tpu.memref_slice %arg2[%c9_i32_37, %c0_i32_38] : memref<16x128xf32, #tpu.memory_space<vmem>> -> memref<1x128xf32, #tpu.memory_space<vmem>>
    %c0_i32_39 = arith.constant 0 : i32
    %68 = tpu.memref_slice %arg4[%66, %c0_i32_39] : memref<64x128xf32, #tpu.memory_space<any>> -> memref<1x128xf32, #tpu.memory_space<any>>
    %69 = tpu.memref_slice %arg5[%c9_i32_36] : memref<16x!tpu.dma_semaphore, #tpu.memory_space<semaphore_mem>> -> memref<1x!tpu.dma_semaphore, #tpu.memory_space<semaphore_mem>>
    %70 = tpu.memref_squeeze %69 : memref<1x!tpu.dma_semaphore, #tpu.memory_space<semaphore_mem>> -> memref<!tpu.dma_semaphore, #tpu.memory_space<semaphore_mem>>
    tpu.enqueue_dma source(%67 : memref<1x128xf32, #tpu.memory_space<vmem>>) target(%68 : memref<1x128xf32, #tpu.memory_space<any>>) target_semaphore(%70 : memref<!tpu.dma_semaphore, #tpu.memory_space<semaphore_mem>>)
    %c10_i32 = arith.constant 10 : i32
    %71 = arith.addi %0, %c10_i32 : i32
    %72 = arith.index_cast %71 : i32 to index
    %73 = memref.load %arg1[%72] : memref<16xi32, #tpu.memory_space<smem>>
    %c10_i32_40 = arith.constant 10 : i32
    %c10_i32_41 = arith.constant 10 : i32
    %c0_i32_42 = arith.constant 0 : i32
    %74 = tpu.memref_slice %arg2[%c10_i32_41, %c0_i32_42] : memref<16x128xf32, #tpu.memory_space<vmem>> -> memref<1x128xf32, #tpu.memory_space<vmem>>
    %c0_i32_43 = arith.constant 0 : i32
    %75 = tpu.memref_slice %arg4[%73, %c0_i32_43] : memref<64x128xf32, #tpu.memory_space<any>> -> memref<1x128xf32, #tpu.memory_space<any>>
    %76 = tpu.memref_slice %arg5[%c10_i32_40] : memref<16x!tpu.dma_semaphore, #tpu.memory_space<semaphore_mem>> -> memref<1x!tpu.dma_semaphore, #tpu.memory_space<semaphore_mem>>
    %77 = tpu.memref_squeeze %76 : memref<1x!tpu.dma_semaphore, #tpu.memory_space<semaphore_mem>> -> memref<!tpu.dma_semaphore, #tpu.memory_space<semaphore_mem>>
    tpu.enqueue_dma source(%74 : memref<1x128xf32, #tpu.memory_space<vmem>>) target(%75 : memref<1x128xf32, #tpu.memory_space<any>>) target_semaphore(%77 : memref<!tpu.dma_semaphore, #tpu.memory_space<semaphore_mem>>)
    %c11_i32 = arith.constant 11 : i32
    %78 = arith.addi %0, %c11_i32 : i32
    %79 = arith.index_cast %78 : i32 to index
    %80 = memref.load %arg1[%79] : memref<16xi32, #tpu.memory_space<smem>>
    %c11_i32_44 = arith.constant 11 : i32
    %c11_i32_45 = arith.constant 11 : i32
    %c0_i32_46 = arith.constant 0 : i32
    %81 = tpu.memref_slice %arg2[%c11_i32_45, %c0_i32_46] : memref<16x128xf32, #tpu.memory_space<vmem>> -> memref<1x128xf32, #tpu.memory_space<vmem>>
    %c0_i32_47 = arith.constant 0 : i32
    %82 = tpu.memref_slice %arg4[%80, %c0_i32_47] : memref<64x128xf32, #tpu.memory_space<any>> -> memref<1x128xf32, #tpu.memory_space<any>>
    %83 = tpu.memref_slice %arg5[%c11_i32_44] : memref<16x!tpu.dma_semaphore, #tpu.memory_space<semaphore_mem>> -> memref<1x!tpu.dma_semaphore, #tpu.memory_space<semaphore_mem>>
    %84 = tpu.memref_squeeze %83 : memref<1x!tpu.dma_semaphore, #tpu.memory_space<semaphore_mem>> -> memref<!tpu.dma_semaphore, #tpu.memory_space<semaphore_mem>>
    tpu.enqueue_dma source(%81 : memref<1x128xf32, #tpu.memory_space<vmem>>) target(%82 : memref<1x128xf32, #tpu.memory_space<any>>) target_semaphore(%84 : memref<!tpu.dma_semaphore, #tpu.memory_space<semaphore_mem>>)
    %c12_i32 = arith.constant 12 : i32
    %85 = arith.addi %0, %c12_i32 : i32
    %86 = arith.index_cast %85 : i32 to index
    %87 = memref.load %arg1[%86] : memref<16xi32, #tpu.memory_space<smem>>
    %c12_i32_48 = arith.constant 12 : i32
    %c12_i32_49 = arith.constant 12 : i32
    %c0_i32_50 = arith.constant 0 : i32
    %88 = tpu.memref_slice %arg2[%c12_i32_49, %c0_i32_50] : memref<16x128xf32, #tpu.memory_space<vmem>> -> memref<1x128xf32, #tpu.memory_space<vmem>>
    %c0_i32_51 = arith.constant 0 : i32
    %89 = tpu.memref_slice %arg4[%87, %c0_i32_51] : memref<64x128xf32, #tpu.memory_space<any>> -> memref<1x128xf32, #tpu.memory_space<any>>
    %90 = tpu.memref_slice %arg5[%c12_i32_48] : memref<16x!tpu.dma_semaphore, #tpu.memory_space<semaphore_mem>> -> memref<1x!tpu.dma_semaphore, #tpu.memory_space<semaphore_mem>>
    %91 = tpu.memref_squeeze %90 : memref<1x!tpu.dma_semaphore, #tpu.memory_space<semaphore_mem>> -> memref<!tpu.dma_semaphore, #tpu.memory_space<semaphore_mem>>
    tpu.enqueue_dma source(%88 : memref<1x128xf32, #tpu.memory_space<vmem>>) target(%89 : memref<1x128xf32, #tpu.memory_space<any>>) target_semaphore(%91 : memref<!tpu.dma_semaphore, #tpu.memory_space<semaphore_mem>>)
    %c13_i32 = arith.constant 13 : i32
    %92 = arith.addi %0, %c13_i32 : i32
    %93 = arith.index_cast %92 : i32 to index
    %94 = memref.load %arg1[%93] : memref<16xi32, #tpu.memory_space<smem>>
    %c13_i32_52 = arith.constant 13 : i32
    %c13_i32_53 = arith.constant 13 : i32
    %c0_i32_54 = arith.constant 0 : i32
    %95 = tpu.memref_slice %arg2[%c13_i32_53, %c0_i32_54] : memref<16x128xf32, #tpu.memory_space<vmem>> -> memref<1x128xf32, #tpu.memory_space<vmem>>
    %c0_i32_55 = arith.constant 0 : i32
    %96 = tpu.memref_slice %arg4[%94, %c0_i32_55] : memref<64x128xf32, #tpu.memory_space<any>> -> memref<1x128xf32, #tpu.memory_space<any>>
    %97 = tpu.memref_slice %arg5[%c13_i32_52] : memref<16x!tpu.dma_semaphore, #tpu.memory_space<semaphore_mem>> -> memref<1x!tpu.dma_semaphore, #tpu.memory_space<semaphore_mem>>
    %98 = tpu.memref_squeeze %97 : memref<1x!tpu.dma_semaphore, #tpu.memory_space<semaphore_mem>> -> memref<!tpu.dma_semaphore, #tpu.memory_space<semaphore_mem>>
    tpu.enqueue_dma source(%95 : memref<1x128xf32, #tpu.memory_space<vmem>>) target(%96 : memref<1x128xf32, #tpu.memory_space<any>>) target_semaphore(%98 : memref<!tpu.dma_semaphore, #tpu.memory_space<semaphore_mem>>)
    %c14_i32 = arith.constant 14 : i32
    %99 = arith.addi %0, %c14_i32 : i32
    %100 = arith.index_cast %99 : i32 to index
    %101 = memref.load %arg1[%100] : memref<16xi32, #tpu.memory_space<smem>>
    %c14_i32_56 = arith.constant 14 : i32
    %c14_i32_57 = arith.constant 14 : i32
    %c0_i32_58 = arith.constant 0 : i32
    %102 = tpu.memref_slice %arg2[%c14_i32_57, %c0_i32_58] : memref<16x128xf32, #tpu.memory_space<vmem>> -> memref<1x128xf32, #tpu.memory_space<vmem>>
    %c0_i32_59 = arith.constant 0 : i32
    %103 = tpu.memref_slice %arg4[%101, %c0_i32_59] : memref<64x128xf32, #tpu.memory_space<any>> -> memref<1x128xf32, #tpu.memory_space<any>>
    %104 = tpu.memref_slice %arg5[%c14_i32_56] : memref<16x!tpu.dma_semaphore, #tpu.memory_space<semaphore_mem>> -> memref<1x!tpu.dma_semaphore, #tpu.memory_space<semaphore_mem>>
    %105 = tpu.memref_squeeze %104 : memref<1x!tpu.dma_semaphore, #tpu.memory_space<semaphore_mem>> -> memref<!tpu.dma_semaphore, #tpu.memory_space<semaphore_mem>>
    tpu.enqueue_dma source(%102 : memref<1x128xf32, #tpu.memory_space<vmem>>) target(%103 : memref<1x128xf32, #tpu.memory_space<any>>) target_semaphore(%105 : memref<!tpu.dma_semaphore, #tpu.memory_space<semaphore_mem>>)
    %c15_i32 = arith.constant 15 : i32
    %106 = arith.addi %0, %c15_i32 : i32
    %107 = arith.index_cast %106 : i32 to index
    %108 = memref.load %arg1[%107] : memref<16xi32, #tpu.memory_space<smem>>
    %c15_i32_60 = arith.constant 15 : i32
    %c15_i32_61 = arith.constant 15 : i32
    %c0_i32_62 = arith.constant 0 : i32
    %109 = tpu.memref_slice %arg2[%c15_i32_61, %c0_i32_62] : memref<16x128xf32, #tpu.memory_space<vmem>> -> memref<1x128xf32, #tpu.memory_space<vmem>>
    %c0_i32_63 = arith.constant 0 : i32
    %110 = tpu.memref_slice %arg4[%108, %c0_i32_63] : memref<64x128xf32, #tpu.memory_space<any>> -> memref<1x128xf32, #tpu.memory_space<any>>
    %111 = tpu.memref_slice %arg5[%c15_i32_60] : memref<16x!tpu.dma_semaphore, #tpu.memory_space<semaphore_mem>> -> memref<1x!tpu.dma_semaphore, #tpu.memory_space<semaphore_mem>>
    %112 = tpu.memref_squeeze %111 : memref<1x!tpu.dma_semaphore, #tpu.memory_space<semaphore_mem>> -> memref<!tpu.dma_semaphore, #tpu.memory_space<semaphore_mem>>
    tpu.enqueue_dma source(%109 : memref<1x128xf32, #tpu.memory_space<vmem>>) target(%110 : memref<1x128xf32, #tpu.memory_space<any>>) target_semaphore(%112 : memref<!tpu.dma_semaphore, #tpu.memory_space<semaphore_mem>>)
    %c0_i32_64 = arith.constant 0 : i32
    %c0_i32_65 = arith.constant 0 : i32
    %c0_i32_66 = arith.constant 0 : i32
    %113 = tpu.memref_slice %arg2[%c0_i32_65, %c0_i32_66] : memref<16x128xf32, #tpu.memory_space<vmem>> -> memref<1x128xf32, #tpu.memory_space<vmem>>
    %c0_i32_67 = arith.constant 0 : i32
    %114 = tpu.memref_slice %arg4[%3, %c0_i32_67] : memref<64x128xf32, #tpu.memory_space<any>> -> memref<1x128xf32, #tpu.memory_space<any>>
    %115 = tpu.memref_slice %arg5[%c0_i32_64] : memref<16x!tpu.dma_semaphore, #tpu.memory_space<semaphore_mem>> -> memref<1x!tpu.dma_semaphore, #tpu.memory_space<semaphore_mem>>
    %116 = tpu.memref_squeeze %115 : memref<1x!tpu.dma_semaphore, #tpu.memory_space<semaphore_mem>> -> memref<!tpu.dma_semaphore, #tpu.memory_space<semaphore_mem>>
    tpu.wait_dma2 semaphore(%116 : memref<!tpu.dma_semaphore, #tpu.memory_space<semaphore_mem>>) src(%113 : memref<1x128xf32, #tpu.memory_space<vmem>>) dst(%114 : memref<1x128xf32, #tpu.memory_space<any>>)
    %c1_i32_68 = arith.constant 1 : i32
    %c1_i32_69 = arith.constant 1 : i32
    %c0_i32_70 = arith.constant 0 : i32
    %117 = tpu.memref_slice %arg2[%c1_i32_69, %c0_i32_70] : memref<16x128xf32, #tpu.memory_space<vmem>> -> memref<1x128xf32, #tpu.memory_space<vmem>>
    %c0_i32_71 = arith.constant 0 : i32
    %118 = tpu.memref_slice %arg4[%10, %c0_i32_71] : memref<64x128xf32, #tpu.memory_space<any>> -> memref<1x128xf32, #tpu.memory_space<any>>
    %119 = tpu.memref_slice %arg5[%c1_i32_68] : memref<16x!tpu.dma_semaphore, #tpu.memory_space<semaphore_mem>> -> memref<1x!tpu.dma_semaphore, #tpu.memory_space<semaphore_mem>>
    %120 = tpu.memref_squeeze %119 : memref<1x!tpu.dma_semaphore, #tpu.memory_space<semaphore_mem>> -> memref<!tpu.dma_semaphore, #tpu.memory_space<semaphore_mem>>
    tpu.wait_dma2 semaphore(%120 : memref<!tpu.dma_semaphore, #tpu.memory_space<semaphore_mem>>) src(%117 : memref<1x128xf32, #tpu.memory_space<vmem>>) dst(%118 : memref<1x128xf32, #tpu.memory_space<any>>)
    %c2_i32_72 = arith.constant 2 : i32
    %c2_i32_73 = arith.constant 2 : i32
    %c0_i32_74 = arith.constant 0 : i32
    %121 = tpu.memref_slice %arg2[%c2_i32_73, %c0_i32_74] : memref<16x128xf32, #tpu.memory_space<vmem>> -> memref<1x128xf32, #tpu.memory_space<vmem>>
    %c0_i32_75 = arith.constant 0 : i32
    %122 = tpu.memref_slice %arg4[%17, %c0_i32_75] : memref<64x128xf32, #tpu.memory_space<any>> -> memref<1x128xf32, #tpu.memory_space<any>>
    %123 = tpu.memref_slice %arg5[%c2_i32_72] : memref<16x!tpu.dma_semaphore, #tpu.memory_space<semaphore_mem>> -> memref<1x!tpu.dma_semaphore, #tpu.memory_space<semaphore_mem>>
    %124 = tpu.memref_squeeze %123 : memref<1x!tpu.dma_semaphore, #tpu.memory_space<semaphore_mem>> -> memref<!tpu.dma_semaphore, #tpu.memory_space<semaphore_mem>>
    tpu.wait_dma2 semaphore(%124 : memref<!tpu.dma_semaphore, #tpu.memory_space<semaphore_mem>>) src(%121 : memref<1x128xf32, #tpu.memory_space<vmem>>) dst(%122 : memref<1x128xf32, #tpu.memory_space<any>>)
    %c3_i32_76 = arith.constant 3 : i32
    %c3_i32_77 = arith.constant 3 : i32
    %c0_i32_78 = arith.constant 0 : i32
    %125 = tpu.memref_slice %arg2[%c3_i32_77, %c0_i32_78] : memref<16x128xf32, #tpu.memory_space<vmem>> -> memref<1x128xf32, #tpu.memory_space<vmem>>
    %c0_i32_79 = arith.constant 0 : i32
    %126 = tpu.memref_slice %arg4[%24, %c0_i32_79] : memref<64x128xf32, #tpu.memory_space<any>> -> memref<1x128xf32, #tpu.memory_space<any>>
    %127 = tpu.memref_slice %arg5[%c3_i32_76] : memref<16x!tpu.dma_semaphore, #tpu.memory_space<semaphore_mem>> -> memref<1x!tpu.dma_semaphore, #tpu.memory_space<semaphore_mem>>
    %128 = tpu.memref_squeeze %127 : memref<1x!tpu.dma_semaphore, #tpu.memory_space<semaphore_mem>> -> memref<!tpu.dma_semaphore, #tpu.memory_space<semaphore_mem>>
    tpu.wait_dma2 semaphore(%128 : memref<!tpu.dma_semaphore, #tpu.memory_space<semaphore_mem>>) src(%125 : memref<1x128xf32, #tpu.memory_space<vmem>>) dst(%126 : memref<1x128xf32, #tpu.memory_space<any>>)
    %c4_i32_80 = arith.constant 4 : i32
    %c4_i32_81 = arith.constant 4 : i32
    %c0_i32_82 = arith.constant 0 : i32
    %129 = tpu.memref_slice %arg2[%c4_i32_81, %c0_i32_82] : memref<16x128xf32, #tpu.memory_space<vmem>> -> memref<1x128xf32, #tpu.memory_space<vmem>>
    %c0_i32_83 = arith.constant 0 : i32
    %130 = tpu.memref_slice %arg4[%31, %c0_i32_83] : memref<64x128xf32, #tpu.memory_space<any>> -> memref<1x128xf32, #tpu.memory_space<any>>
    %131 = tpu.memref_slice %arg5[%c4_i32_80] : memref<16x!tpu.dma_semaphore, #tpu.memory_space<semaphore_mem>> -> memref<1x!tpu.dma_semaphore, #tpu.memory_space<semaphore_mem>>
    %132 = tpu.memref_squeeze %131 : memref<1x!tpu.dma_semaphore, #tpu.memory_space<semaphore_mem>> -> memref<!tpu.dma_semaphore, #tpu.memory_space<semaphore_mem>>
    tpu.wait_dma2 semaphore(%132 : memref<!tpu.dma_semaphore, #tpu.memory_space<semaphore_mem>>) src(%129 : memref<1x128xf32, #tpu.memory_space<vmem>>) dst(%130 : memref<1x128xf32, #tpu.memory_space<any>>)
    %c5_i32_84 = arith.constant 5 : i32
    %c5_i32_85 = arith.constant 5 : i32
    %c0_i32_86 = arith.constant 0 : i32
    %133 = tpu.memref_slice %arg2[%c5_i32_85, %c0_i32_86] : memref<16x128xf32, #tpu.memory_space<vmem>> -> memref<1x128xf32, #tpu.memory_space<vmem>>
    %c0_i32_87 = arith.constant 0 : i32
    %134 = tpu.memref_slice %arg4[%38, %c0_i32_87] : memref<64x128xf32, #tpu.memory_space<any>> -> memref<1x128xf32, #tpu.memory_space<any>>
    %135 = tpu.memref_slice %arg5[%c5_i32_84] : memref<16x!tpu.dma_semaphore, #tpu.memory_space<semaphore_mem>> -> memref<1x!tpu.dma_semaphore, #tpu.memory_space<semaphore_mem>>
    %136 = tpu.memref_squeeze %135 : memref<1x!tpu.dma_semaphore, #tpu.memory_space<semaphore_mem>> -> memref<!tpu.dma_semaphore, #tpu.memory_space<semaphore_mem>>
    tpu.wait_dma2 semaphore(%136 : memref<!tpu.dma_semaphore, #tpu.memory_space<semaphore_mem>>) src(%133 : memref<1x128xf32, #tpu.memory_space<vmem>>) dst(%134 : memref<1x128xf32, #tpu.memory_space<any>>)
    %c6_i32_88 = arith.constant 6 : i32
    %c6_i32_89 = arith.constant 6 : i32
    %c0_i32_90 = arith.constant 0 : i32
    %137 = tpu.memref_slice %arg2[%c6_i32_89, %c0_i32_90] : memref<16x128xf32, #tpu.memory_space<vmem>> -> memref<1x128xf32, #tpu.memory_space<vmem>>
    %c0_i32_91 = arith.constant 0 : i32
    %138 = tpu.memref_slice %arg4[%45, %c0_i32_91] : memref<64x128xf32, #tpu.memory_space<any>> -> memref<1x128xf32, #tpu.memory_space<any>>
    %139 = tpu.memref_slice %arg5[%c6_i32_88] : memref<16x!tpu.dma_semaphore, #tpu.memory_space<semaphore_mem>> -> memref<1x!tpu.dma_semaphore, #tpu.memory_space<semaphore_mem>>
    %140 = tpu.memref_squeeze %139 : memref<1x!tpu.dma_semaphore, #tpu.memory_space<semaphore_mem>> -> memref<!tpu.dma_semaphore, #tpu.memory_space<semaphore_mem>>
    tpu.wait_dma2 semaphore(%140 : memref<!tpu.dma_semaphore, #tpu.memory_space<semaphore_mem>>) src(%137 : memref<1x128xf32, #tpu.memory_space<vmem>>) dst(%138 : memref<1x128xf32, #tpu.memory_space<any>>)
    %c7_i32_92 = arith.constant 7 : i32
    %c7_i32_93 = arith.constant 7 : i32
    %c0_i32_94 = arith.constant 0 : i32
    %141 = tpu.memref_slice %arg2[%c7_i32_93, %c0_i32_94] : memref<16x128xf32, #tpu.memory_space<vmem>> -> memref<1x128xf32, #tpu.memory_space<vmem>>
    %c0_i32_95 = arith.constant 0 : i32
    %142 = tpu.memref_slice %arg4[%52, %c0_i32_95] : memref<64x128xf32, #tpu.memory_space<any>> -> memref<1x128xf32, #tpu.memory_space<any>>
    %143 = tpu.memref_slice %arg5[%c7_i32_92] : memref<16x!tpu.dma_semaphore, #tpu.memory_space<semaphore_mem>> -> memref<1x!tpu.dma_semaphore, #tpu.memory_space<semaphore_mem>>
    %144 = tpu.memref_squeeze %143 : memref<1x!tpu.dma_semaphore, #tpu.memory_space<semaphore_mem>> -> memref<!tpu.dma_semaphore, #tpu.memory_space<semaphore_mem>>
    tpu.wait_dma2 semaphore(%144 : memref<!tpu.dma_semaphore, #tpu.memory_space<semaphore_mem>>) src(%141 : memref<1x128xf32, #tpu.memory_space<vmem>>) dst(%142 : memref<1x128xf32, #tpu.memory_space<any>>)
    %c8_i32_96 = arith.constant 8 : i32
    %c8_i32_97 = arith.constant 8 : i32
    %c0_i32_98 = arith.constant 0 : i32
    %145 = tpu.memref_slice %arg2[%c8_i32_97, %c0_i32_98] : memref<16x128xf32, #tpu.memory_space<vmem>> -> memref<1x128xf32, #tpu.memory_space<vmem>>
    %c0_i32_99 = arith.constant 0 : i32
    %146 = tpu.memref_slice %arg4[%59, %c0_i32_99] : memref<64x128xf32, #tpu.memory_space<any>> -> memref<1x128xf32, #tpu.memory_space<any>>
    %147 = tpu.memref_slice %arg5[%c8_i32_96] : memref<16x!tpu.dma_semaphore, #tpu.memory_space<semaphore_mem>> -> memref<1x!tpu.dma_semaphore, #tpu.memory_space<semaphore_mem>>
    %148 = tpu.memref_squeeze %147 : memref<1x!tpu.dma_semaphore, #tpu.memory_space<semaphore_mem>> -> memref<!tpu.dma_semaphore, #tpu.memory_space<semaphore_mem>>
    tpu.wait_dma2 semaphore(%148 : memref<!tpu.dma_semaphore, #tpu.memory_space<semaphore_mem>>) src(%145 : memref<1x128xf32, #tpu.memory_space<vmem>>) dst(%146 : memref<1x128xf32, #tpu.memory_space<any>>)
    %c9_i32_100 = arith.constant 9 : i32
    %c9_i32_101 = arith.constant 9 : i32
    %c0_i32_102 = arith.constant 0 : i32
    %149 = tpu.memref_slice %arg2[%c9_i32_101, %c0_i32_102] : memref<16x128xf32, #tpu.memory_space<vmem>> -> memref<1x128xf32, #tpu.memory_space<vmem>>
    %c0_i32_103 = arith.constant 0 : i32
    %150 = tpu.memref_slice %arg4[%66, %c0_i32_103] : memref<64x128xf32, #tpu.memory_space<any>> -> memref<1x128xf32, #tpu.memory_space<any>>
    %151 = tpu.memref_slice %arg5[%c9_i32_100] : memref<16x!tpu.dma_semaphore, #tpu.memory_space<semaphore_mem>> -> memref<1x!tpu.dma_semaphore, #tpu.memory_space<semaphore_mem>>
    %152 = tpu.memref_squeeze %151 : memref<1x!tpu.dma_semaphore, #tpu.memory_space<semaphore_mem>> -> memref<!tpu.dma_semaphore, #tpu.memory_space<semaphore_mem>>
    tpu.wait_dma2 semaphore(%152 : memref<!tpu.dma_semaphore, #tpu.memory_space<semaphore_mem>>) src(%149 : memref<1x128xf32, #tpu.memory_space<vmem>>) dst(%150 : memref<1x128xf32, #tpu.memory_space<any>>)
    %c10_i32_104 = arith.constant 10 : i32
    %c10_i32_105 = arith.constant 10 : i32
    %c0_i32_106 = arith.constant 0 : i32
    %153 = tpu.memref_slice %arg2[%c10_i32_105, %c0_i32_106] : memref<16x128xf32, #tpu.memory_space<vmem>> -> memref<1x128xf32, #tpu.memory_space<vmem>>
    %c0_i32_107 = arith.constant 0 : i32
    %154 = tpu.memref_slice %arg4[%73, %c0_i32_107] : memref<64x128xf32, #tpu.memory_space<any>> -> memref<1x128xf32, #tpu.memory_space<any>>
    %155 = tpu.memref_slice %arg5[%c10_i32_104] : memref<16x!tpu.dma_semaphore, #tpu.memory_space<semaphore_mem>> -> memref<1x!tpu.dma_semaphore, #tpu.memory_space<semaphore_mem>>
    %156 = tpu.memref_squeeze %155 : memref<1x!tpu.dma_semaphore, #tpu.memory_space<semaphore_mem>> -> memref<!tpu.dma_semaphore, #tpu.memory_space<semaphore_mem>>
    tpu.wait_dma2 semaphore(%156 : memref<!tpu.dma_semaphore, #tpu.memory_space<semaphore_mem>>) src(%153 : memref<1x128xf32, #tpu.memory_space<vmem>>) dst(%154 : memref<1x128xf32, #tpu.memory_space<any>>)
    %c11_i32_108 = arith.constant 11 : i32
    %c11_i32_109 = arith.constant 11 : i32
    %c0_i32_110 = arith.constant 0 : i32
    %157 = tpu.memref_slice %arg2[%c11_i32_109, %c0_i32_110] : memref<16x128xf32, #tpu.memory_space<vmem>> -> memref<1x128xf32, #tpu.memory_space<vmem>>
    %c0_i32_111 = arith.constant 0 : i32
    %158 = tpu.memref_slice %arg4[%80, %c0_i32_111] : memref<64x128xf32, #tpu.memory_space<any>> -> memref<1x128xf32, #tpu.memory_space<any>>
    %159 = tpu.memref_slice %arg5[%c11_i32_108] : memref<16x!tpu.dma_semaphore, #tpu.memory_space<semaphore_mem>> -> memref<1x!tpu.dma_semaphore, #tpu.memory_space<semaphore_mem>>
    %160 = tpu.memref_squeeze %159 : memref<1x!tpu.dma_semaphore, #tpu.memory_space<semaphore_mem>> -> memref<!tpu.dma_semaphore, #tpu.memory_space<semaphore_mem>>
    tpu.wait_dma2 semaphore(%160 : memref<!tpu.dma_semaphore, #tpu.memory_space<semaphore_mem>>) src(%157 : memref<1x128xf32, #tpu.memory_space<vmem>>) dst(%158 : memref<1x128xf32, #tpu.memory_space<any>>)
    %c12_i32_112 = arith.constant 12 : i32
    %c12_i32_113 = arith.constant 12 : i32
    %c0_i32_114 = arith.constant 0 : i32
    %161 = tpu.memref_slice %arg2[%c12_i32_113, %c0_i32_114] : memref<16x128xf32, #tpu.memory_space<vmem>> -> memref<1x128xf32, #tpu.memory_space<vmem>>
    %c0_i32_115 = arith.constant 0 : i32
    %162 = tpu.memref_slice %arg4[%87, %c0_i32_115] : memref<64x128xf32, #tpu.memory_space<any>> -> memref<1x128xf32, #tpu.memory_space<any>>
    %163 = tpu.memref_slice %arg5[%c12_i32_112] : memref<16x!tpu.dma_semaphore, #tpu.memory_space<semaphore_mem>> -> memref<1x!tpu.dma_semaphore, #tpu.memory_space<semaphore_mem>>
    %164 = tpu.memref_squeeze %163 : memref<1x!tpu.dma_semaphore, #tpu.memory_space<semaphore_mem>> -> memref<!tpu.dma_semaphore, #tpu.memory_space<semaphore_mem>>
    tpu.wait_dma2 semaphore(%164 : memref<!tpu.dma_semaphore, #tpu.memory_space<semaphore_mem>>) src(%161 : memref<1x128xf32, #tpu.memory_space<vmem>>) dst(%162 : memref<1x128xf32, #tpu.memory_space<any>>)
    %c13_i32_116 = arith.constant 13 : i32
    %c13_i32_117 = arith.constant 13 : i32
    %c0_i32_118 = arith.constant 0 : i32
    %165 = tpu.memref_slice %arg2[%c13_i32_117, %c0_i32_118] : memref<16x128xf32, #tpu.memory_space<vmem>> -> memref<1x128xf32, #tpu.memory_space<vmem>>
    %c0_i32_119 = arith.constant 0 : i32
    %166 = tpu.memref_slice %arg4[%94, %c0_i32_119] : memref<64x128xf32, #tpu.memory_space<any>> -> memref<1x128xf32, #tpu.memory_space<any>>
    %167 = tpu.memref_slice %arg5[%c13_i32_116] : memref<16x!tpu.dma_semaphore, #tpu.memory_space<semaphore_mem>> -> memref<1x!tpu.dma_semaphore, #tpu.memory_space<semaphore_mem>>
    %168 = tpu.memref_squeeze %167 : memref<1x!tpu.dma_semaphore, #tpu.memory_space<semaphore_mem>> -> memref<!tpu.dma_semaphore, #tpu.memory_space<semaphore_mem>>
    tpu.wait_dma2 semaphore(%168 : memref<!tpu.dma_semaphore, #tpu.memory_space<semaphore_mem>>) src(%165 : memref<1x128xf32, #tpu.memory_space<vmem>>) dst(%166 : memref<1x128xf32, #tpu.memory_space<any>>)
    %c14_i32_120 = arith.constant 14 : i32
    %c14_i32_121 = arith.constant 14 : i32
    %c0_i32_122 = arith.constant 0 : i32
    %169 = tpu.memref_slice %arg2[%c14_i32_121, %c0_i32_122] : memref<16x128xf32, #tpu.memory_space<vmem>> -> memref<1x128xf32, #tpu.memory_space<vmem>>
    %c0_i32_123 = arith.constant 0 : i32
    %170 = tpu.memref_slice %arg4[%101, %c0_i32_123] : memref<64x128xf32, #tpu.memory_space<any>> -> memref<1x128xf32, #tpu.memory_space<any>>
    %171 = tpu.memref_slice %arg5[%c14_i32_120] : memref<16x!tpu.dma_semaphore, #tpu.memory_space<semaphore_mem>> -> memref<1x!tpu.dma_semaphore, #tpu.memory_space<semaphore_mem>>
    %172 = tpu.memref_squeeze %171 : memref<1x!tpu.dma_semaphore, #tpu.memory_space<semaphore_mem>> -> memref<!tpu.dma_semaphore, #tpu.memory_space<semaphore_mem>>
    tpu.wait_dma2 semaphore(%172 : memref<!tpu.dma_semaphore, #tpu.memory_space<semaphore_mem>>) src(%169 : memref<1x128xf32, #tpu.memory_space<vmem>>) dst(%170 : memref<1x128xf32, #tpu.memory_space<any>>)
    %c15_i32_124 = arith.constant 15 : i32
    %c15_i32_125 = arith.constant 15 : i32
    %c0_i32_126 = arith.constant 0 : i32
    %173 = tpu.memref_slice %arg2[%c15_i32_125, %c0_i32_126] : memref<16x128xf32, #tpu.memory_space<vmem>> -> memref<1x128xf32, #tpu.memory_space<vmem>>
    %c0_i32_127 = arith.constant 0 : i32
    %174 = tpu.memref_slice %arg4[%108, %c0_i32_127] : memref<64x128xf32, #tpu.memory_space<any>> -> memref<1x128xf32, #tpu.memory_space<any>>
    %175 = tpu.memref_slice %arg5[%c15_i32_124] : memref<16x!tpu.dma_semaphore, #tpu.memory_space<semaphore_mem>> -> memref<1x!tpu.dma_semaphore, #tpu.memory_space<semaphore_mem>>
    %176 = tpu.memref_squeeze %175 : memref<1x!tpu.dma_semaphore, #tpu.memory_space<semaphore_mem>> -> memref<!tpu.dma_semaphore, #tpu.memory_space<semaphore_mem>>
    tpu.wait_dma2 semaphore(%176 : memref<!tpu.dma_semaphore, #tpu.memory_space<semaphore_mem>>) src(%173 : memref<1x128xf32, #tpu.memory_space<vmem>>) dst(%174 : memref<1x128xf32, #tpu.memory_space<any>>)
    return
  }
  func.func @transform_0(%arg0: i32, %arg1: memref<16xi32, #tpu.memory_space<smem>>) -> (i32, i32) {
    %c0_i32 = arith.constant 0 : i32
    %c0_i32_0 = arith.constant 0 : i32
    return %arg0, %c0_i32 : i32, i32
  }
}

</mosaic_0001>

<llo_original>
// kernel: graph_unpool.1
$region0: #{graph_unpool.1}
  #allocation0 [shape = 'u32[]', space=smem, size = 0x4, offset = 0x4, fixed_abs, tag = 'smem constant byte address 0x4 - core index']
  #allocation1 [shape = 'u32[72,128]{1,0:T(1,128)}', space=vmem, size = 0x9000, scoped, tag = 'internal scratch']
  #allocation2 [shape = 's32[16]{0}', space=sflag, size = 0x40, scoped, tag = 'scratch operand']
  #allocation3 [shape = 's32[1]{0}', space=sflag, size = 0x4, scoped, tag = 'scoped memory for graph_unpool.1']
  #allocation4 [shape = 'u8[512]{0}', space=smem, size = 0x200, scoped, tag = 'prefetched SMEM operand 0']
  #allocation5 [shape = 's32[]', space=sflag, size = 0x4, offset = 0, fixed_abs, tag = 'sflag constant byte address 0x0 - dummy sync flag']
  #allocation6 [shape = 's32[]', space=sflag, size = 0x4, offset = 0, fixed_abs, tag = 'sflag constant byte address 0x0 - dummy sync flag']
  #allocation7 [shape = 's32[]', space=sflag, size = 0x4, offset = 0, fixed_abs, tag = 'sflag constant byte address 0x0 - dummy sync flag']
  #allocation8 [shape = 's32[]', space=sflag, size = 0x4, offset = 0, fixed_abs, tag = 'sflag constant byte address 0x0 - dummy sync flag']
  #allocation9 [shape = 's32[]', space=sflag, size = 0x4, offset = 0, fixed_abs, tag = 'sflag constant byte address 0x0 - dummy sync flag']
  #allocation10 [shape = 's32[]', space=sflag, size = 0x4, offset = 0, fixed_abs, tag = 'sflag constant byte address 0x0 - dummy sync flag']
  #allocation11 [shape = 's32[]', space=sflag, size = 0x4, offset = 0, fixed_abs, tag = 'sflag constant byte address 0x0 - dummy sync flag']
  #allocation12 [shape = 's32[]', space=sflag, size = 0x4, offset = 0, fixed_abs, tag = 'sflag constant byte address 0x0 - dummy sync flag']
  #allocation13 [shape = 's32[]', space=sflag, size = 0x4, offset = 0, fixed_abs, tag = 'sflag constant byte address 0x0 - dummy sync flag']
  #allocation14 [shape = 's32[]', space=sflag, size = 0x4, offset = 0, fixed_abs, tag = 'sflag constant byte address 0x0 - dummy sync flag']
  #allocation15 [shape = 's32[]', space=sflag, size = 0x4, offset = 0, fixed_abs, tag = 'sflag constant byte address 0x0 - dummy sync flag']
  #allocation16 [shape = 's32[]', space=sflag, size = 0x4, offset = 0, fixed_abs, tag = 'sflag constant byte address 0x0 - dummy sync flag']
  #allocation17 [shape = 's32[]', space=sflag, size = 0x4, offset = 0, fixed_abs, tag = 'sflag constant byte address 0x0 - dummy sync flag']
  #allocation18 [shape = 's32[]', space=sflag, size = 0x4, offset = 0, fixed_abs, tag = 'sflag constant byte address 0x0 - dummy sync flag']
  #allocation19 [shape = 's32[]', space=sflag, size = 0x4, offset = 0, fixed_abs, tag = 'sflag constant byte address 0x0 - dummy sync flag']
  #allocation20 [shape = 's32[]', space=sflag, size = 0x4, offset = 0, fixed_abs, tag = 'sflag constant byte address 0x0 - dummy sync flag']
  %s0 = inlined_call_operand.vmem [shape: s32[16], index: 0, kind: input, shape index: {}]
  %s1 = inlined_call_operand.vmem [shape: f32[16,128], index: 1, kind: input, shape index: {}]
  %s2 = inlined_call_operand.vmem [shape: f32[64,128], index: 2, kind: input, shape index: {}, may-alias: {2,3}]
  %s3 = inlined_call_operand.vmem [shape: f32[64,128], index: 3, kind: output, shape index: {}, may-alias: {2,3}]
  %s4 = sld [smem:[#allocation0]]
  $region486: #{graph_unpool.1} parent=0
    _
  %s6 = ssub.s32 1, %s4
  %s7 = scalar_select 0, %s6, %s4
  %s9 = sshll.u32 %s0, 4
  %s10 = int_to_ptr.vmem [resolvable:$true] %s9
  %12 = dma.vmem_to_smem %s10, 16, [#allocation4], [#allocation3]
  %14 = dma.done [#allocation3], 16
  %15 = sfence
  // Predicated region
  $region2: #{graph_unpool.1} parent=0 // pred_check
    _
  $region3: #{graph_unpool.1} parent=0 // pred_check_branch
    %17 = sbr.rel (0) target = $region5
  $region4: #{graph_unpool.1} parent=0 // pred_region
    _
  $region5: #{graph_unpool.1} parent=0 // pred_fallthru
    _
  %s18 = smul.u32 0, 16
  %s19 = sld [smem:[#allocation4 + %s18]]
  %s20 = scalar_lea.vmem %s3, %s19
  // Predicated region
  $region6: #{graph_unpool.1} parent=0 // pred_check
    _
  $region7: #{graph_unpool.1} parent=0 // pred_check_branch
    %22 = sbr.rel target = $region9
  $region8: #{graph_unpool.1} parent=0 // pred_region
    // Predicated region
    $region21: #{graph_unpool.1} parent=8 // pred_check
      _
    $region22: #{graph_unpool.1} parent=8 // pred_check_branch
      %38 = sbr.rel (0) target = $region24
    $region23: #{graph_unpool.1} parent=8 // pred_region
      %s40 = ssub.s32 2, 1
      loop: start=0, step=1, limit=1
      $region25: #{graph_unpool.1} parent=23 // loop_pre_header
        _
      $region26: #{graph_unpool.1} parent=23 // loop_header
        %s42 = sphi 0, %s46
        %p43 = scmp.ge.s32.totalorder %s42, 1
        %s47 = sphi %s1, %s1
        %s48 = sphi %s20, %s20
      $region27: #{graph_unpool.1} parent=23 // loop_header_branch
        %45 = sbr.rel (%p43) target = $region31
      $region28: #{graph_unpool.1} parent=23 // loop_body
        %v49 = vld [vmem:[%s47] sm:%s40]
        %50 = vst [vmem:[%s48] sm:%s40] %v49
      $region29: #{graph_unpool.1} parent=23 // loop_footer
        %s46 = sadd.s32 1, %s42
      $region30: #{graph_unpool.1} parent=23 // loop_footer_branch
        %41 = sbr.rel target = $region26
      $region31: #{graph_unpool.1} parent=23 // loop_exit
        _
    $region24: #{graph_unpool.1} parent=8 // pred_fallthru
      _
  $region9: #{graph_unpool.1} parent=0 // pred_fallthru
    _
  // Predicated region
  $region10: #{graph_unpool.1} parent=0 // pred_check
    _
  $region11: #{graph_unpool.1} parent=0 // pred_check_branch
    %24 = sbr.rel (0) target = $region13
  $region12: #{graph_unpool.1} parent=0 // pred_region
    %s26 = ssub.s32 2, 1
    loop: start=0, step=1, limit=1
    $region14: #{graph_unpool.1} parent=12 // loop_pre_header
      _
    $region15: #{graph_unpool.1} parent=12 // loop_header
      %s28 = sphi 0, %s32
      %p29 = scmp.ge.s32.totalorder %s28, 1
      %s33 = sphi %s1, %s1
      %s34 = sphi %s20, %s20
    $region16: #{graph_unpool.1} parent=12 // loop_header_branch
      %31 = sbr.rel (%p29) target = $region20
    $region17: #{graph_unpool.1} parent=12 // loop_body
      %v35 = vld [vmem:[%s33] sm:%s26]
      %36 = vst [vmem:[%s34] sm:%s26] %v35
    $region18: #{graph_unpool.1} parent=12 // loop_footer
      %s32 = sadd.s32 1, %s28
    $region19: #{graph_unpool.1} parent=12 // loop_footer_branch
      %27 = sbr.rel target = $region15
    $region20: #{graph_unpool.1} parent=12 // loop_exit
      _
  $region13: #{graph_unpool.1} parent=0 // pred_fallthru
    _
  // Predicated region
  $region32: #{graph_unpool.1} parent=0 // pred_check
    _
  $region33: #{graph_unpool.1} parent=0 // pred_check_branch
    %53 = sbr.rel (0) target = $region35
  $region34: #{graph_unpool.1} parent=0 // pred_region
    %54 = vsyncadd [#allocation2], 16
  $region35: #{graph_unpool.1} parent=0 // pred_fallthru
    _
  %s55 = sadd.s32 %s18, 1
  %s56 = sld [smem:[#allocation4 + %s55]]
  %s57 = scalar_lea.vmem %s1, 1
  %s58 = scalar_lea.vmem %s3, %s56
  %s59 = scalar_lea.sflag [#allocation2], 1
  // Predicated region
  $region36: #{graph_unpool.1} parent=0 // pred_check
    _
  $region37: #{graph_unpool.1} parent=0 // pred_check_branch
    %61 = sbr.rel target = $region39
  $region38: #{graph_unpool.1} parent=0 // pred_region
    // Predicated region
    $region51: #{graph_unpool.1} parent=38 // pred_check
      _
    $region52: #{graph_unpool.1} parent=38 // pred_check_branch
      %77 = sbr.rel (0) target = $region54
    $region53: #{graph_unpool.1} parent=38 // pred_region
      %s79 = ssub.s32 2, 1
      loop: start=0, step=1, limit=1
      $region55: #{graph_unpool.1} parent=53 // loop_pre_header
        _
      $region56: #{graph_unpool.1} parent=53 // loop_header
        %s81 = sphi 0, %s85
        %p82 = scmp.ge.s32.totalorder %s81, 1
        %s86 = sphi %s57, %s57
        %s87 = sphi %s58, %s58
      $region57: #{graph_unpool.1} parent=53 // loop_header_branch
        %84 = sbr.rel (%p82) target = $region61
      $region58: #{graph_unpool.1} parent=53 // loop_body
        %v88 = vld [vmem:[%s86] sm:%s79]
        %89 = vst [vmem:[%s87] sm:%s79] %v88
      $region59: #{graph_unpool.1} parent=53 // loop_footer
        %s85 = sadd.s32 1, %s81
      $region60: #{graph_unpool.1} parent=53 // loop_footer_branch
        %80 = sbr.rel target = $region56
      $region61: #{graph_unpool.1} parent=53 // loop_exit
        _
    $region54: #{graph_unpool.1} parent=38 // pred_fallthru
      _
  $region39: #{graph_unpool.1} parent=0 // pred_fallthru
    _
  // Predicated region
  $region40: #{graph_unpool.1} parent=0 // pred_check
    _
  $region41: #{graph_unpool.1} parent=0 // pred_check_branch
    %63 = sbr.rel (0) target = $region43
  $region42: #{graph_unpool.1} parent=0 // pred_region
    %s65 = ssub.s32 2, 1
    loop: start=0, step=1, limit=1
    $region44: #{graph_unpool.1} parent=42 // loop_pre_header
      _
    $region45: #{graph_unpool.1} parent=42 // loop_header
      %s67 = sphi 0, %s71
      %p68 = scmp.ge.s32.totalorder %s67, 1
      %s72 = sphi %s57, %s57
      %s73 = sphi %s58, %s58
    $region46: #{graph_unpool.1} parent=42 // loop_header_branch
      %70 = sbr.rel (%p68) target = $region50
    $region47: #{graph_unpool.1} parent=42 // loop_body
      %v74 = vld [vmem:[%s72] sm:%s65]
      %75 = vst [vmem:[%s73] sm:%s65] %v74
    $region48: #{graph_unpool.1} parent=42 // loop_footer
      %s71 = sadd.s32 1, %s67
    $region49: #{graph_unpool.1} parent=42 // loop_footer_branch
      %66 = sbr.rel target = $region45
    $region50: #{graph_unpool.1} parent=42 // loop_exit
      _
  $region43: #{graph_unpool.1} parent=0 // pred_fallthru
    _
  // Predicated region
  $region62: #{graph_unpool.1} parent=0 // pred_check
    _
  $region63: #{graph_unpool.1} parent=0 // pred_check_branch
    %92 = sbr.rel (0) target = $region65
  $region64: #{graph_unpool.1} parent=0 // pred_region
    %93 = vsyncadd %s59, 16
  $region65: #{graph_unpool.1} parent=0 // pred_fallthru
    _
  %s94 = sadd.s32 %s18, 2
  %s95 = sld [smem:[#allocation4 + %s94]]
  %s96 = scalar_lea.vmem %s1, 2
  %s97 = scalar_lea.vmem %s3, %s95
  %s98 = scalar_lea.sflag [#allocation2], 2
  // Predicated region
  $region66: #{graph_unpool.1} parent=0 // pred_check
    _
  $region67: #{graph_unpool.1} parent=0 // pred_check_branch
    %100 = sbr.rel target = $region69
  $region68: #{graph_unpool.1} parent=0 // pred_region
    // Predicated region
    $region81: #{graph_unpool.1} parent=68 // pred_check
      _
    $region82: #{graph_unpool.1} parent=68 // pred_check_branch
      %116 = sbr.rel (0) target = $region84
    $region83: #{graph_unpool.1} parent=68 // pred_region
      %s118 = ssub.s32 2, 1
      loop: start=0, step=1, limit=1
      $region85: #{graph_unpool.1} parent=83 // loop_pre_header
        _
      $region86: #{graph_unpool.1} parent=83 // loop_header
        %s120 = sphi 0, %s124
        %p121 = scmp.ge.s32.totalorder %s120, 1
        %s125 = sphi %s96, %s96
        %s126 = sphi %s97, %s97
      $region87: #{graph_unpool.1} parent=83 // loop_header_branch
        %123 = sbr.rel (%p121) target = $region91
      $region88: #{graph_unpool.1} parent=83 // loop_body
        %v127 = vld [vmem:[%s125] sm:%s118]
        %128 = vst [vmem:[%s126] sm:%s118] %v127
      $region89: #{graph_unpool.1} parent=83 // loop_footer
        %s124 = sadd.s32 1, %s120
      $region90: #{graph_unpool.1} parent=83 // loop_footer_branch
        %119 = sbr.rel target = $region86
      $region91: #{graph_unpool.1} parent=83 // loop_exit
        _
    $region84: #{graph_unpool.1} parent=68 // pred_fallthru
      _
  $region69: #{graph_unpool.1} parent=0 // pred_fallthru
    _
  // Predicated region
  $region70: #{graph_unpool.1} parent=0 // pred_check
    _
  $region71: #{graph_unpool.1} parent=0 // pred_check_branch
    %102 = sbr.rel (0) target = $region73
  $region72: #{graph_unpool.1} parent=0 // pred_region
    %s104 = ssub.s32 2, 1
    loop: start=0, step=1, limit=1
    $region74: #{graph_unpool.1} parent=72 // loop_pre_header
      _
    $region75: #{graph_unpool.1} parent=72 // loop_header
      %s106 = sphi 0, %s110
      %p107 = scmp.ge.s32.totalorder %s106, 1
      %s111 = sphi %s96, %s96
      %s112 = sphi %s97, %s97
    $region76: #{graph_unpool.1} parent=72 // loop_header_branch
      %109 = sbr.rel (%p107) target = $region80
    $region77: #{graph_unpool.1} parent=72 // loop_body
      %v113 = vld [vmem:[%s111] sm:%s104]
      %114 = vst [vmem:[%s112] sm:%s104] %v113
    $region78: #{graph_unpool.1} parent=72 // loop_footer
      %s110 = sadd.s32 1, %s106
    $region79: #{graph_unpool.1} parent=72 // loop_footer_branch
      %105 = sbr.rel target = $region75
    $region80: #{graph_unpool.1} parent=72 // loop_exit
      _
  $region73: #{graph_unpool.1} parent=0 // pred_fallthru
    _
  // Predicated region
  $region92: #{graph_unpool.1} parent=0 // pred_check
    _
  $region93: #{graph_unpool.1} parent=0 // pred_check_branch
    %131 = sbr.rel (0) target = $region95
  $region94: #{graph_unpool.1} parent=0 // pred_region
    %132 = vsyncadd %s98, 16
  $region95: #{graph_unpool.1} parent=0 // pred_fallthru
    _
  %s133 = sadd.s32 %s18, 3
  %s134 = sld [smem:[#allocation4 + %s133]]
  %s135 = scalar_lea.vmem %s1, 3
  %s136 = scalar_lea.vmem %s3, %s134
  %s137 = scalar_lea.sflag [#allocation2], 3
  // Predicated region
  $region96: #{graph_unpool.1} parent=0 // pred_check
    _
  $region97: #{graph_unpool.1} parent=0 // pred_check_branch
    %139 = sbr.rel target = $region99
  $region98: #{graph_unpool.1} parent=0 // pred_region
    // Predicated region
    $region111: #{graph_unpool.1} parent=98 // pred_check
      _
    $region112: #{graph_unpool.1} parent=98 // pred_check_branch
      %155 = sbr.rel (0) target = $region114
    $region113: #{graph_unpool.1} parent=98 // pred_region
      %s157 = ssub.s32 2, 1
      loop: start=0, step=1, limit=1
      $region115: #{graph_unpool.1} parent=113 // loop_pre_header
        _
      $region116: #{graph_unpool.1} parent=113 // loop_header
        %s159 = sphi 0, %s163
        %p160 = scmp.ge.s32.totalorder %s159, 1
        %s164 = sphi %s135, %s135
        %s165 = sphi %s136, %s136
      $region117: #{graph_unpool.1} parent=113 // loop_header_branch
        %162 = sbr.rel (%p160) target = $region121
      $region118: #{graph_unpool.1} parent=113 // loop_body
        %v166 = vld [vmem:[%s164] sm:%s157]
        %167 = vst [vmem:[%s165] sm:%s157] %v166
      $region119: #{graph_unpool.1} parent=113 // loop_footer
        %s163 = sadd.s32 1, %s159
      $region120: #{graph_unpool.1} parent=113 // loop_footer_branch
        %158 = sbr.rel target = $region116
      $region121: #{graph_unpool.1} parent=113 // loop_exit
        _
    $region114: #{graph_unpool.1} parent=98 // pred_fallthru
      _
  $region99: #{graph_unpool.1} parent=0 // pred_fallthru
    _
  // Predicated region
  $region100: #{graph_unpool.1} parent=0 // pred_check
    _
  $region101: #{graph_unpool.1} parent=0 // pred_check_branch
    %141 = sbr.rel (0) target = $region103
  $region102: #{graph_unpool.1} parent=0 // pred_region
    %s143 = ssub.s32 2, 1
    loop: start=0, step=1, limit=1
    $region104: #{graph_unpool.1} parent=102 // loop_pre_header
      _
    $region105: #{graph_unpool.1} parent=102 // loop_header
      %s145 = sphi 0, %s149
      %p146 = scmp.ge.s32.totalorder %s145, 1
      %s150 = sphi %s135, %s135
      %s151 = sphi %s136, %s136
    $region106: #{graph_unpool.1} parent=102 // loop_header_branch
      %148 = sbr.rel (%p146) target = $region110
    $region107: #{graph_unpool.1} parent=102 // loop_body
      %v152 = vld [vmem:[%s150] sm:%s143]
      %153 = vst [vmem:[%s151] sm:%s143] %v152
    $region108: #{graph_unpool.1} parent=102 // loop_footer
      %s149 = sadd.s32 1, %s145
    $region109: #{graph_unpool.1} parent=102 // loop_footer_branch
      %144 = sbr.rel target = $region105
    $region110: #{graph_unpool.1} parent=102 // loop_exit
      _
  $region103: #{graph_unpool.1} parent=0 // pred_fallthru
    _
  // Predicated region
  $region122: #{graph_unpool.1} parent=0 // pred_check
    _
  $region123: #{graph_unpool.1} parent=0 // pred_check_branch
    %170 = sbr.rel (0) target = $region125
  $region124: #{graph_unpool.1} parent=0 // pred_region
    %171 = vsyncadd %s137, 16
  $region125: #{graph_unpool.1} parent=0 // pred_fallthru
    _
  %s172 = sadd.s32 %s18, 4
  %s173 = sld [smem:[#allocation4 + %s172]]
  %s174 = scalar_lea.vmem %s1, 4
  %s175 = scalar_lea.vmem %s3, %s173
  %s176 = scalar_lea.sflag [#allocation2], 4
  // Predicated region
  $region126: #{graph_unpool.1} parent=0 // pred_check
    _
  $region127: #{graph_unpool.1} parent=0 // pred_check_branch
    %178 = sbr.rel target = $region129
  $region128: #{graph_unpool.1} parent=0 // pred_region
    // Predicated region
    $region141: #{graph_unpool.1} parent=128 // pred_check
      _
    $region142: #{graph_unpool.1} parent=128 // pred_check_branch
      %194 = sbr.rel (0) target = $region144
    $region143: #{graph_unpool.1} parent=128 // pred_region
      %s196 = ssub.s32 2, 1
      loop: start=0, step=1, limit=1
      $region145: #{graph_unpool.1} parent=143 // loop_pre_header
        _
      $region146: #{graph_unpool.1} parent=143 // loop_header
        %s198 = sphi 0, %s202
        %p199 = scmp.ge.s32.totalorder %s198, 1
        %s203 = sphi %s174, %s174
        %s204 = sphi %s175, %s175
      $region147: #{graph_unpool.1} parent=143 // loop_header_branch
        %201 = sbr.rel (%p199) target = $region151
      $region148: #{graph_unpool.1} parent=143 // loop_body
        %v205 = vld [vmem:[%s203] sm:%s196]
        %206 = vst [vmem:[%s204] sm:%s196] %v205
      $region149: #{graph_unpool.1} parent=143 // loop_footer
        %s202 = sadd.s32 1, %s198
      $region150: #{graph_unpool.1} parent=143 // loop_footer_branch
        %197 = sbr.rel target = $region146
      $region151: #{graph_unpool.1} parent=143 // loop_exit
        _
    $region144: #{graph_unpool.1} parent=128 // pred_fallthru
      _
  $region129: #{graph_unpool.1} parent=0 // pred_fallthru
    _
  // Predicated region
  $region130: #{graph_unpool.1} parent=0 // pred_check
    _
  $region131: #{graph_unpool.1} parent=0 // pred_check_branch
    %180 = sbr.rel (0) target = $region133
  $region132: #{graph_unpool.1} parent=0 // pred_region
    %s182 = ssub.s32 2, 1
    loop: start=0, step=1, limit=1
    $region134: #{graph_unpool.1} parent=132 // loop_pre_header
      _
    $region135: #{graph_unpool.1} parent=132 // loop_header
      %s184 = sphi 0, %s188
      %p185 = scmp.ge.s32.totalorder %s184, 1
      %s189 = sphi %s174, %s174
      %s190 = sphi %s175, %s175
    $region136: #{graph_unpool.1} parent=132 // loop_header_branch
      %187 = sbr.rel (%p185) target = $region140
    $region137: #{graph_unpool.1} parent=132 // loop_body
      %v191 = vld [vmem:[%s189] sm:%s182]
      %192 = vst [vmem:[%s190] sm:%s182] %v191
    $region138: #{graph_unpool.1} parent=132 // loop_footer
      %s188 = sadd.s32 1, %s184
    $region139: #{graph_unpool.1} parent=132 // loop_footer_branch
      %183 = sbr.rel target = $region135
    $region140: #{graph_unpool.1} parent=132 // loop_exit
      _
  $region133: #{graph_unpool.1} parent=0 // pred_fallthru
    _
  // Predicated region
  $region152: #{graph_unpool.1} parent=0 // pred_check
    _
  $region153: #{graph_unpool.1} parent=0 // pred_check_branch
    %209 = sbr.rel (0) target = $region155
  $region154: #{graph_unpool.1} parent=0 // pred_region
    %210 = vsyncadd %s176, 16
  $region155: #{graph_unpool.1} parent=0 // pred_fallthru
    _
  %s211 = sadd.s32 %s18, 5
  %s212 = sld [smem:[#allocation4 + %s211]]
  %s213 = scalar_lea.vmem %s1, 5
  %s214 = scalar_lea.vmem %s3, %s212
  %s215 = scalar_lea.sflag [#allocation2], 5
  // Predicated region
  $region156: #{graph_unpool.1} parent=0 // pred_check
    _
  $region157: #{graph_unpool.1} parent=0 // pred_check_branch
    %217 = sbr.rel target = $region159
  $region158: #{graph_unpool.1} parent=0 // pred_region
    // Predicated region
    $region171: #{graph_unpool.1} parent=158 // pred_check
      _
    $region172: #{graph_unpool.1} parent=158 // pred_check_branch
      %233 = sbr.rel (0) target = $region174
    $region173: #{graph_unpool.1} parent=158 // pred_region
      %s235 = ssub.s32 2, 1
      loop: start=0, step=1, limit=1
      $region175: #{graph_unpool.1} parent=173 // loop_pre_header
        _
      $region176: #{graph_unpool.1} parent=173 // loop_header
        %s237 = sphi 0, %s241
        %p238 = scmp.ge.s32.totalorder %s237, 1
        %s242 = sphi %s213, %s213
        %s243 = sphi %s214, %s214
      $region177: #{graph_unpool.1} parent=173 // loop_header_branch
        %240 = sbr.rel (%p238) target = $region181
      $region178: #{graph_unpool.1} parent=173 // loop_body
        %v244 = vld [vmem:[%s242] sm:%s235]
        %245 = vst [vmem:[%s243] sm:%s235] %v244
      $region179: #{graph_unpool.1} parent=173 // loop_footer
        %s241 = sadd.s32 1, %s237
      $region180: #{graph_unpool.1} parent=173 // loop_footer_branch
        %236 = sbr.rel target = $region176
      $region181: #{graph_unpool.1} parent=173 // loop_exit
        _
    $region174: #{graph_unpool.1} parent=158 // pred_fallthru
      _
  $region159: #{graph_unpool.1} parent=0 // pred_fallthru
    _
  // Predicated region
  $region160: #{graph_unpool.1} parent=0 // pred_check
    _
  $region161: #{graph_unpool.1} parent=0 // pred_check_branch
    %219 = sbr.rel (0) target = $region163
  $region162: #{graph_unpool.1} parent=0 // pred_region
    %s221 = ssub.s32 2, 1
    loop: start=0, step=1, limit=1
    $region164: #{graph_unpool.1} parent=162 // loop_pre_header
      _
    $region165: #{graph_unpool.1} parent=162 // loop_header
      %s223 = sphi 0, %s227
      %p224 = scmp.ge.s32.totalorder %s223, 1
      %s228 = sphi %s213, %s213
      %s229 = sphi %s214, %s214
    $region166: #{graph_unpool.1} parent=162 // loop_header_branch
      %226 = sbr.rel (%p224) target = $region170
    $region167: #{graph_unpool.1} parent=162 // loop_body
      %v230 = vld [vmem:[%s228] sm:%s221]
      %231 = vst [vmem:[%s229] sm:%s221] %v230
    $region168: #{graph_unpool.1} parent=162 // loop_footer
      %s227 = sadd.s32 1, %s223
    $region169: #{graph_unpool.1} parent=162 // loop_footer_branch
      %222 = sbr.rel target = $region165
    $region170: #{graph_unpool.1} parent=162 // loop_exit
      _
  $region163: #{graph_unpool.1} parent=0 // pred_fallthru
    _
  // Predicated region
  $region182: #{graph_unpool.1} parent=0 // pred_check
    _
  $region183: #{graph_unpool.1} parent=0 // pred_check_branch
    %248 = sbr.rel (0) target = $region185
  $region184: #{graph_unpool.1} parent=0 // pred_region
    %249 = vsyncadd %s215, 16
  $region185: #{graph_unpool.1} parent=0 // pred_fallthru
    _
  %s250 = sadd.s32 %s18, 6
  %s251 = sld [smem:[#allocation4 + %s250]]
  %s252 = scalar_lea.vmem %s1, 6
  %s253 = scalar_lea.vmem %s3, %s251
  %s254 = scalar_lea.sflag [#allocation2], 6
  // Predicated region
  $region186: #{graph_unpool.1} parent=0 // pred_check
    _
  $region187: #{graph_unpool.1} parent=0 // pred_check_branch
    %256 = sbr.rel target = $region189
  $region188: #{graph_unpool.1} parent=0 // pred_region
    // Predicated region
    $region201: #{graph_unpool.1} parent=188 // pred_check
      _
    $region202: #{graph_unpool.1} parent=188 // pred_check_branch
      %272 = sbr.rel (0) target = $region204
    $region203: #{graph_unpool.1} parent=188 // pred_region
      %s274 = ssub.s32 2, 1
      loop: start=0, step=1, limit=1
      $region205: #{graph_unpool.1} parent=203 // loop_pre_header
        _
      $region206: #{graph_unpool.1} parent=203 // loop_header
        %s276 = sphi 0, %s280
        %p277 = scmp.ge.s32.totalorder %s276, 1
        %s281 = sphi %s252, %s252
        %s282 = sphi %s253, %s253
      $region207: #{graph_unpool.1} parent=203 // loop_header_branch
        %279 = sbr.rel (%p277) target = $region211
      $region208: #{graph_unpool.1} parent=203 // loop_body
        %v283 = vld [vmem:[%s281] sm:%s274]
        %284 = vst [vmem:[%s282] sm:%s274] %v283
      $region209: #{graph_unpool.1} parent=203 // loop_footer
        %s280 = sadd.s32 1, %s276
      $region210: #{graph_unpool.1} parent=203 // loop_footer_branch
        %275 = sbr.rel target = $region206
      $region211: #{graph_unpool.1} parent=203 // loop_exit
        _
    $region204: #{graph_unpool.1} parent=188 // pred_fallthru
      _
  $region189: #{graph_unpool.1} parent=0 // pred_fallthru
    _
  // Predicated region
  $region190: #{graph_unpool.1} parent=0 // pred_check
    _
  $region191: #{graph_unpool.1} parent=0 // pred_check_branch
    %258 = sbr.rel (0) target = $region193
  $region192: #{graph_unpool.1} parent=0 // pred_region
    %s260 = ssub.s32 2, 1
    loop: start=0, step=1, limit=1
    $region194: #{graph_unpool.1} parent=192 // loop_pre_header
      _
    $region195: #{graph_unpool.1} parent=192 // loop_header
      %s262 = sphi 0, %s266
      %p263 = scmp.ge.s32.totalorder %s262, 1
      %s267 = sphi %s252, %s252
      %s268 = sphi %s253, %s253
    $region196: #{graph_unpool.1} parent=192 // loop_header_branch
      %265 = sbr.rel (%p263) target = $region200
    $region197: #{graph_unpool.1} parent=192 // loop_body
      %v269 = vld [vmem:[%s267] sm:%s260]
      %270 = vst [vmem:[%s268] sm:%s260] %v269
    $region198: #{graph_unpool.1} parent=192 // loop_footer
      %s266 = sadd.s32 1, %s262
    $region199: #{graph_unpool.1} parent=192 // loop_footer_branch
      %261 = sbr.rel target = $region195
    $region200: #{graph_unpool.1} parent=192 // loop_exit
      _
  $region193: #{graph_unpool.1} parent=0 // pred_fallthru
    _
  // Predicated region
  $region212: #{graph_unpool.1} parent=0 // pred_check
    _
  $region213: #{graph_unpool.1} parent=0 // pred_check_branch
    %287 = sbr.rel (0) target = $region215
  $region214: #{graph_unpool.1} parent=0 // pred_region
    %288 = vsyncadd %s254, 16
  $region215: #{graph_unpool.1} parent=0 // pred_fallthru
    _
  %s289 = sadd.s32 %s18, 7
  %s290 = sld [smem:[#allocation4 + %s289]]
  %s291 = scalar_lea.vmem %s1, 7
  %s292 = scalar_lea.vmem %s3, %s290
  %s293 = scalar_lea.sflag [#allocation2], 7
  // Predicated region
  $region216: #{graph_unpool.1} parent=0 // pred_check
    _
  $region217: #{graph_unpool.1} parent=0 // pred_check_branch
    %295 = sbr.rel target = $region219
  $region218: #{graph_unpool.1} parent=0 // pred_region
    // Predicated region
    $region231: #{graph_unpool.1} parent=218 // pred_check
      _
    $region232: #{graph_unpool.1} parent=218 // pred_check_branch
      %311 = sbr.rel (0) target = $region234
    $region233: #{graph_unpool.1} parent=218 // pred_region
      %s313 = ssub.s32 2, 1
      loop: start=0, step=1, limit=1
      $region235: #{graph_unpool.1} parent=233 // loop_pre_header
        _
      $region236: #{graph_unpool.1} parent=233 // loop_header
        %s315 = sphi 0, %s319
        %p316 = scmp.ge.s32.totalorder %s315, 1
        %s320 = sphi %s291, %s291
        %s321 = sphi %s292, %s292
      $region237: #{graph_unpool.1} parent=233 // loop_header_branch
        %318 = sbr.rel (%p316) target = $region241
      $region238: #{graph_unpool.1} parent=233 // loop_body
        %v322 = vld [vmem:[%s320] sm:%s313]
        %323 = vst [vmem:[%s321] sm:%s313] %v322
      $region239: #{graph_unpool.1} parent=233 // loop_footer
        %s319 = sadd.s32 1, %s315
      $region240: #{graph_unpool.1} parent=233 // loop_footer_branch
        %314 = sbr.rel target = $region236
      $region241: #{graph_unpool.1} parent=233 // loop_exit
        _
    $region234: #{graph_unpool.1} parent=218 // pred_fallthru
      _
  $region219: #{graph_unpool.1} parent=0 // pred_fallthru
    _
  // Predicated region
  $region220: #{graph_unpool.1} parent=0 // pred_check
    _
  $region221: #{graph_unpool.1} parent=0 // pred_check_branch
    %297 = sbr.rel (0) target = $region223
  $region222: #{graph_unpool.1} parent=0 // pred_region
    %s299 = ssub.s32 2, 1
    loop: start=0, step=1, limit=1
    $region224: #{graph_unpool.1} parent=222 // loop_pre_header
      _
    $region225: #{graph_unpool.1} parent=222 // loop_header
      %s301 = sphi 0, %s305
      %p302 = scmp.ge.s32.totalorder %s301, 1
      %s306 = sphi %s291, %s291
      %s307 = sphi %s292, %s292
    $region226: #{graph_unpool.1} parent=222 // loop_header_branch
      %304 = sbr.rel (%p302) target = $region230
    $region227: #{graph_unpool.1} parent=222 // loop_body
      %v308 = vld [vmem:[%s306] sm:%s299]
      %309 = vst [vmem:[%s307] sm:%s299] %v308
    $region228: #{graph_unpool.1} parent=222 // loop_footer
      %s305 = sadd.s32 1, %s301
    $region229: #{graph_unpool.1} parent=222 // loop_footer_branch
      %300 = sbr.rel target = $region225
    $region230: #{graph_unpool.1} parent=222 // loop_exit
      _
  $region223: #{graph_unpool.1} parent=0 // pred_fallthru
    _
  // Predicated region
  $region242: #{graph_unpool.1} parent=0 // pred_check
    _
  $region243: #{graph_unpool.1} parent=0 // pred_check_branch
    %326 = sbr.rel (0) target = $region245
  $region244: #{graph_unpool.1} parent=0 // pred_region
    %327 = vsyncadd %s293, 16
  $region245: #{graph_unpool.1} parent=0 // pred_fallthru
    _
  %s328 = sadd.s32 %s18, 8
  %s329 = sld [smem:[#allocation4 + %s328]]
  %s330 = scalar_lea.vmem %s1, 8
  %s331 = scalar_lea.vmem %s3, %s329
  %s332 = scalar_lea.sflag [#allocation2], 8
  // Predicated region
  $region246: #{graph_unpool.1} parent=0 // pred_check
    _
  $region247: #{graph_unpool.1} parent=0 // pred_check_branch
    %334 = sbr.rel target = $region249
  $region248: #{graph_unpool.1} parent=0 // pred_region
    // Predicated region
    $region261: #{graph_unpool.1} parent=248 // pred_check
      _
    $region262: #{graph_unpool.1} parent=248 // pred_check_branch
      %350 = sbr.rel (0) target = $region264
    $region263: #{graph_unpool.1} parent=248 // pred_region
      %s352 = ssub.s32 2, 1
      loop: start=0, step=1, limit=1
      $region265: #{graph_unpool.1} parent=263 // loop_pre_header
        _
      $region266: #{graph_unpool.1} parent=263 // loop_header
        %s354 = sphi 0, %s358
        %p355 = scmp.ge.s32.totalorder %s354, 1
        %s359 = sphi %s330, %s330
        %s360 = sphi %s331, %s331
      $region267: #{graph_unpool.1} parent=263 // loop_header_branch
        %357 = sbr.rel (%p355) target = $region271
      $region268: #{graph_unpool.1} parent=263 // loop_body
        %v361 = vld [vmem:[%s359] sm:%s352]
        %362 = vst [vmem:[%s360] sm:%s352] %v361
      $region269: #{graph_unpool.1} parent=263 // loop_footer
        %s358 = sadd.s32 1, %s354
      $region270: #{graph_unpool.1} parent=263 // loop_footer_branch
        %353 = sbr.rel target = $region266
      $region271: #{graph_unpool.1} parent=263 // loop_exit
        _
    $region264: #{graph_unpool.1} parent=248 // pred_fallthru
      _
  $region249: #{graph_unpool.1} parent=0 // pred_fallthru
    _
  // Predicated region
  $region250: #{graph_unpool.1} parent=0 // pred_check
    _
  $region251: #{graph_unpool.1} parent=0 // pred_check_branch
    %336 = sbr.rel (0) target = $region253
  $region252: #{graph_unpool.1} parent=0 // pred_region
    %s338 = ssub.s32 2, 1
    loop: start=0, step=1, limit=1
    $region254: #{graph_unpool.1} parent=252 // loop_pre_header
      _
    $region255: #{graph_unpool.1} parent=252 // loop_header
      %s340 = sphi 0, %s344
      %p341 = scmp.ge.s32.totalorder %s340, 1
      %s345 = sphi %s330, %s330
      %s346 = sphi %s331, %s331
    $region256: #{graph_unpool.1} parent=252 // loop_header_branch
      %343 = sbr.rel (%p341) target = $region260
    $region257: #{graph_unpool.1} parent=252 // loop_body
      %v347 = vld [vmem:[%s345] sm:%s338]
      %348 = vst [vmem:[%s346] sm:%s338] %v347
    $region258: #{graph_unpool.1} parent=252 // loop_footer
      %s344 = sadd.s32 1, %s340
    $region259: #{graph_unpool.1} parent=252 // loop_footer_branch
      %339 = sbr.rel target = $region255
    $region260: #{graph_unpool.1} parent=252 // loop_exit
      _
  $region253: #{graph_unpool.1} parent=0 // pred_fallthru
    _
  // Predicated region
  $region272: #{graph_unpool.1} parent=0 // pred_check
    _
  $region273: #{graph_unpool.1} parent=0 // pred_check_branch
    %365 = sbr.rel (0) target = $region275
  $region274: #{graph_unpool.1} parent=0 // pred_region
    %366 = vsyncadd %s332, 16
  $region275: #{graph_unpool.1} parent=0 // pred_fallthru
    _
  %s367 = sadd.s32 %s18, 9
  %s368 = sld [smem:[#allocation4 + %s367]]
  %s369 = scalar_lea.vmem %s1, 9
  %s370 = scalar_lea.vmem %s3, %s368
  %s371 = scalar_lea.sflag [#allocation2], 9
  // Predicated region
  $region276: #{graph_unpool.1} parent=0 // pred_check
    _
  $region277: #{graph_unpool.1} parent=0 // pred_check_branch
    %373 = sbr.rel target = $region279
  $region278: #{graph_unpool.1} parent=0 // pred_region
    // Predicated region
    $region291: #{graph_unpool.1} parent=278 // pred_check
      _
    $region292: #{graph_unpool.1} parent=278 // pred_check_branch
      %389 = sbr.rel (0) target = $region294
    $region293: #{graph_unpool.1} parent=278 // pred_region
      %s391 = ssub.s32 2, 1
      loop: start=0, step=1, limit=1
      $region295: #{graph_unpool.1} parent=293 // loop_pre_header
        _
      $region296: #{graph_unpool.1} parent=293 // loop_header
        %s393 = sphi 0, %s397
        %p394 = scmp.ge.s32.totalorder %s393, 1
        %s398 = sphi %s369, %s369
        %s399 = sphi %s370, %s370
      $region297: #{graph_unpool.1} parent=293 // loop_header_branch
        %396 = sbr.rel (%p394) target = $region301
      $region298: #{graph_unpool.1} parent=293 // loop_body
        %v400 = vld [vmem:[%s398] sm:%s391]
        %401 = vst [vmem:[%s399] sm:%s391] %v400
      $region299: #{graph_unpool.1} parent=293 // loop_footer
        %s397 = sadd.s32 1, %s393
      $region300: #{graph_unpool.1} parent=293 // loop_footer_branch
        %392 = sbr.rel target = $region296
      $region301: #{graph_unpool.1} parent=293 // loop_exit
        _
    $region294: #{graph_unpool.1} parent=278 // pred_fallthru
      _
  $region279: #{graph_unpool.1} parent=0 // pred_fallthru
    _
  // Predicated region
  $region280: #{graph_unpool.1} parent=0 // pred_check
    _
  $region281: #{graph_unpool.1} parent=0 // pred_check_branch
    %375 = sbr.rel (0) target = $region283
  $region282: #{graph_unpool.1} parent=0 // pred_region
    %s377 = ssub.s32 2, 1
    loop: start=0, step=1, limit=1
    $region284: #{graph_unpool.1} parent=282 // loop_pre_header
      _
    $region285: #{graph_unpool.1} parent=282 // loop_header
      %s379 = sphi 0, %s383
      %p380 = scmp.ge.s32.totalorder %s379, 1
      %s384 = sphi %s369, %s369
      %s385 = sphi %s370, %s370
    $region286: #{graph_unpool.1} parent=282 // loop_header_branch
      %382 = sbr.rel (%p380) target = $region290
    $region287: #{graph_unpool.1} parent=282 // loop_body
      %v386 = vld [vmem:[%s384] sm:%s377]
      %387 = vst [vmem:[%s385] sm:%s377] %v386
    $region288: #{graph_unpool.1} parent=282 // loop_footer
      %s383 = sadd.s32 1, %s379
    $region289: #{graph_unpool.1} parent=282 // loop_footer_branch
      %378 = sbr.rel target = $region285
    $region290: #{graph_unpool.1} parent=282 // loop_exit
      _
  $region283: #{graph_unpool.1} parent=0 // pred_fallthru
    _
  // Predicated region
  $region302: #{graph_unpool.1} parent=0 // pred_check
    _
  $region303: #{graph_unpool.1} parent=0 // pred_check_branch
    %404 = sbr.rel (0) target = $region305
  $region304: #{graph_unpool.1} parent=0 // pred_region
    %405 = vsyncadd %s371, 16
  $region305: #{graph_unpool.1} parent=0 // pred_fallthru
    _
  %s406 = sadd.s32 %s18, 10
  %s407 = sld [smem:[#allocation4 + %s406]]
  %s408 = scalar_lea.vmem %s1, 10
  %s409 = scalar_lea.vmem %s3, %s407
  %s410 = scalar_lea.sflag [#allocation2], 10
  // Predicated region
  $region306: #{graph_unpool.1} parent=0 // pred_check
    _
  $region307: #{graph_unpool.1} parent=0 // pred_check_branch
    %412 = sbr.rel target = $region309
  $region308: #{graph_unpool.1} parent=0 // pred_region
    // Predicated region
    $region321: #{graph_unpool.1} parent=308 // pred_check
      _
    $region322: #{graph_unpool.1} parent=308 // pred_check_branch
      %428 = sbr.rel (0) target = $region324
    $region323: #{graph_unpool.1} parent=308 // pred_region
      %s430 = ssub.s32 2, 1
      loop: start=0, step=1, limit=1
      $region325: #{graph_unpool.1} parent=323 // loop_pre_header
        _
      $region326: #{graph_unpool.1} parent=323 // loop_header
        %s432 = sphi 0, %s436
        %p433 = scmp.ge.s32.totalorder %s432, 1
        %s437 = sphi %s408, %s408
        %s438 = sphi %s409, %s409
      $region327: #{graph_unpool.1} parent=323 // loop_header_branch
        %435 = sbr.rel (%p433) target = $region331
      $region328: #{graph_unpool.1} parent=323 // loop_body
        %v439 = vld [vmem:[%s437] sm:%s430]
        %440 = vst [vmem:[%s438] sm:%s430] %v439
      $region329: #{graph_unpool.1} parent=323 // loop_footer
        %s436 = sadd.s32 1, %s432
      $region330: #{graph_unpool.1} parent=323 // loop_footer_branch
        %431 = sbr.rel target = $region326
      $region331: #{graph_unpool.1} parent=323 // loop_exit
        _
    $region324: #{graph_unpool.1} parent=308 // pred_fallthru
      _
  $region309: #{graph_unpool.1} parent=0 // pred_fallthru
    _
  // Predicated region
  $region310: #{graph_unpool.1} parent=0 // pred_check
    _
  $region311: #{graph_unpool.1} parent=0 // pred_check_branch
    %414 = sbr.rel (0) target = $region313
  $region312: #{graph_unpool.1} parent=0 // pred_region
    %s416 = ssub.s32 2, 1
    loop: start=0, step=1, limit=1
    $region314: #{graph_unpool.1} parent=312 // loop_pre_header
      _
    $region315: #{graph_unpool.1} parent=312 // loop_header
      %s418 = sphi 0, %s422
      %p419 = scmp.ge.s32.totalorder %s418, 1
      %s423 = sphi %s408, %s408
      %s424 = sphi %s409, %s409
    $region316: #{graph_unpool.1} parent=312 // loop_header_branch
      %421 = sbr.rel (%p419) target = $region320
    $region317: #{graph_unpool.1} parent=312 // loop_body
      %v425 = vld [vmem:[%s423] sm:%s416]
      %426 = vst [vmem:[%s424] sm:%s416] %v425
    $region318: #{graph_unpool.1} parent=312 // loop_footer
      %s422 = sadd.s32 1, %s418
    $region319: #{graph_unpool.1} parent=312 // loop_footer_branch
      %417 = sbr.rel target = $region315
    $region320: #{graph_unpool.1} parent=312 // loop_exit
      _
  $region313: #{graph_unpool.1} parent=0 // pred_fallthru
    _
  // Predicated region
  $region332: #{graph_unpool.1} parent=0 // pred_check
    _
  $region333: #{graph_unpool.1} parent=0 // pred_check_branch
    %443 = sbr.rel (0) target = $region335
  $region334: #{graph_unpool.1} parent=0 // pred_region
    %444 = vsyncadd %s410, 16
  $region335: #{graph_unpool.1} parent=0 // pred_fallthru
    _
  %s445 = sadd.s32 %s18, 11
  %s446 = sld [smem:[#allocation4 + %s445]]
  %s447 = scalar_lea.vmem %s1, 11
  %s448 = scalar_lea.vmem %s3, %s446
  %s449 = scalar_lea.sflag [#allocation2], 11
  // Predicated region
  $region336: #{graph_unpool.1} parent=0 // pred_check
    _
  $region337: #{graph_unpool.1} parent=0 // pred_check_branch
    %451 = sbr.rel target = $region339
  $region338: #{graph_unpool.1} parent=0 // pred_region
    // Predicated region
    $region351: #{graph_unpool.1} parent=338 // pred_check
      _
    $region352: #{graph_unpool.1} parent=338 // pred_check_branch
      %467 = sbr.rel (0) target = $region354
    $region353: #{graph_unpool.1} parent=338 // pred_region
      %s469 = ssub.s32 2, 1
      loop: start=0, step=1, limit=1
      $region355: #{graph_unpool.1} parent=353 // loop_pre_header
        _
      $region356: #{graph_unpool.1} parent=353 // loop_header
        %s471 = sphi 0, %s475
        %p472 = scmp.ge.s32.totalorder %s471, 1
        %s476 = sphi %s447, %s447
        %s477 = sphi %s448, %s448
      $region357: #{graph_unpool.1} parent=353 // loop_header_branch
        %474 = sbr.rel (%p472) target = $region361
      $region358: #{graph_unpool.1} parent=353 // loop_body
        %v478 = vld [vmem:[%s476] sm:%s469]
        %479 = vst [vmem:[%s477] sm:%s469] %v478
      $region359: #{graph_unpool.1} parent=353 // loop_footer
        %s475 = sadd.s32 1, %s471
      $region360: #{graph_unpool.1} parent=353 // loop_footer_branch
        %470 = sbr.rel target = $region356
      $region361: #{graph_unpool.1} parent=353 // loop_exit
        _
    $region354: #{graph_unpool.1} parent=338 // pred_fallthru
      _
  $region339: #{graph_unpool.1} parent=0 // pred_fallthru
    _
  // Predicated region
  $region340: #{graph_unpool.1} parent=0 // pred_check
    _
  $region341: #{graph_unpool.1} parent=0 // pred_check_branch
    %453 = sbr.rel (0) target = $region343
  $region342: #{graph_unpool.1} parent=0 // pred_region
    %s455 = ssub.s32 2, 1
    loop: start=0, step=1, limit=1
    $region344: #{graph_unpool.1} parent=342 // loop_pre_header
      _
    $region345: #{graph_unpool.1} parent=342 // loop_header
      %s457 = sphi 0, %s461
      %p458 = scmp.ge.s32.totalorder %s457, 1
      %s462 = sphi %s447, %s447
      %s463 = sphi %s448, %s448
    $region346: #{graph_unpool.1} parent=342 // loop_header_branch
      %460 = sbr.rel (%p458) target = $region350
    $region347: #{graph_unpool.1} parent=342 // loop_body
      %v464 = vld [vmem:[%s462] sm:%s455]
      %465 = vst [vmem:[%s463] sm:%s455] %v464
    $region348: #{graph_unpool.1} parent=342 // loop_footer
      %s461 = sadd.s32 1, %s457
    $region349: #{graph_unpool.1} parent=342 // loop_footer_branch
      %456 = sbr.rel target = $region345
    $region350: #{graph_unpool.1} parent=342 // loop_exit
      _
  $region343: #{graph_unpool.1} parent=0 // pred_fallthru
    _
  // Predicated region
  $region362: #{graph_unpool.1} parent=0 // pred_check
    _
  $region363: #{graph_unpool.1} parent=0 // pred_check_branch
    %482 = sbr.rel (0) target = $region365
  $region364: #{graph_unpool.1} parent=0 // pred_region
    %483 = vsyncadd %s449, 16
  $region365: #{graph_unpool.1} parent=0 // pred_fallthru
    _
  %s484 = sadd.s32 %s18, 12
  %s485 = sld [smem:[#allocation4 + %s484]]
  %s486 = scalar_lea.vmem %s1, 12
  %s487 = scalar_lea.vmem %s3, %s485
  %s488 = scalar_lea.sflag [#allocation2], 12
  // Predicated region
  $region366: #{graph_unpool.1} parent=0 // pred_check
    _
  $region367: #{graph_unpool.1} parent=0 // pred_check_branch
    %490 = sbr.rel target = $region369
  $region368: #{graph_unpool.1} parent=0 // pred_region
    // Predicated region
    $region381: #{graph_unpool.1} parent=368 // pred_check
      _
    $region382: #{graph_unpool.1} parent=368 // pred_check_branch
      %506 = sbr.rel (0) target = $region384
    $region383: #{graph_unpool.1} parent=368 // pred_region
      %s508 = ssub.s32 2, 1
      loop: start=0, step=1, limit=1
      $region385: #{graph_unpool.1} parent=383 // loop_pre_header
        _
      $region386: #{graph_unpool.1} parent=383 // loop_header
        %s510 = sphi 0, %s514
        %p511 = scmp.ge.s32.totalorder %s510, 1
        %s515 = sphi %s486, %s486
        %s516 = sphi %s487, %s487
      $region387: #{graph_unpool.1} parent=383 // loop_header_branch
        %513 = sbr.rel (%p511) target = $region391
      $region388: #{graph_unpool.1} parent=383 // loop_body
        %v517 = vld [vmem:[%s515] sm:%s508]
        %518 = vst [vmem:[%s516] sm:%s508] %v517
      $region389: #{graph_unpool.1} parent=383 // loop_footer
        %s514 = sadd.s32 1, %s510
      $region390: #{graph_unpool.1} parent=383 // loop_footer_branch
        %509 = sbr.rel target = $region386
      $region391: #{graph_unpool.1} parent=383 // loop_exit
        _
    $region384: #{graph_unpool.1} parent=368 // pred_fallthru
      _
  $region369: #{graph_unpool.1} parent=0 // pred_fallthru
    _
  // Predicated region
  $region370: #{graph_unpool.1} parent=0 // pred_check
    _
  $region371: #{graph_unpool.1} parent=0 // pred_check_branch
    %492 = sbr.rel (0) target = $region373
  $region372: #{graph_unpool.1} parent=0 // pred_region
    %s494 = ssub.s32 2, 1
    loop: start=0, step=1, limit=1
    $region374: #{graph_unpool.1} parent=372 // loop_pre_header
      _
    $region375: #{graph_unpool.1} parent=372 // loop_header
      %s496 = sphi 0, %s500
      %p497 = scmp.ge.s32.totalorder %s496, 1
      %s501 = sphi %s486, %s486
      %s502 = sphi %s487, %s487
    $region376: #{graph_unpool.1} parent=372 // loop_header_branch
      %499 = sbr.rel (%p497) target = $region380
    $region377: #{graph_unpool.1} parent=372 // loop_body
      %v503 = vld [vmem:[%s501] sm:%s494]
      %504 = vst [vmem:[%s502] sm:%s494] %v503
    $region378: #{graph_unpool.1} parent=372 // loop_footer
      %s500 = sadd.s32 1, %s496
    $region379: #{graph_unpool.1} parent=372 // loop_footer_branch
      %495 = sbr.rel target = $region375
    $region380: #{graph_unpool.1} parent=372 // loop_exit
      _
  $region373: #{graph_unpool.1} parent=0 // pred_fallthru
    _
  // Predicated region
  $region392: #{graph_unpool.1} parent=0 // pred_check
    _
  $region393: #{graph_unpool.1} parent=0 // pred_check_branch
    %521 = sbr.rel (0) target = $region395
  $region394: #{graph_unpool.1} parent=0 // pred_region
    %522 = vsyncadd %s488, 16
  $region395: #{graph_unpool.1} parent=0 // pred_fallthru
    _
  %s523 = sadd.s32 %s18, 13
  %s524 = sld [smem:[#allocation4 + %s523]]
  %s525 = scalar_lea.vmem %s1, 13
  %s526 = scalar_lea.vmem %s3, %s524
  %s527 = scalar_lea.sflag [#allocation2], 13
  // Predicated region
  $region396: #{graph_unpool.1} parent=0 // pred_check
    _
  $region397: #{graph_unpool.1} parent=0 // pred_check_branch
    %529 = sbr.rel target = $region399
  $region398: #{graph_unpool.1} parent=0 // pred_region
    // Predicated region
    $region411: #{graph_unpool.1} parent=398 // pred_check
      _
    $region412: #{graph_unpool.1} parent=398 // pred_check_branch
      %545 = sbr.rel (0) target = $region414
    $region413: #{graph_unpool.1} parent=398 // pred_region
      %s547 = ssub.s32 2, 1
      loop: start=0, step=1, limit=1
      $region415: #{graph_unpool.1} parent=413 // loop_pre_header
        _
      $region416: #{graph_unpool.1} parent=413 // loop_header
        %s549 = sphi 0, %s553
        %p550 = scmp.ge.s32.totalorder %s549, 1
        %s554 = sphi %s525, %s525
        %s555 = sphi %s526, %s526
      $region417: #{graph_unpool.1} parent=413 // loop_header_branch
        %552 = sbr.rel (%p550) target = $region421
      $region418: #{graph_unpool.1} parent=413 // loop_body
        %v556 = vld [vmem:[%s554] sm:%s547]
        %557 = vst [vmem:[%s555] sm:%s547] %v556
      $region419: #{graph_unpool.1} parent=413 // loop_footer
        %s553 = sadd.s32 1, %s549
      $region420: #{graph_unpool.1} parent=413 // loop_footer_branch
        %548 = sbr.rel target = $region416
      $region421: #{graph_unpool.1} parent=413 // loop_exit
        _
    $region414: #{graph_unpool.1} parent=398 // pred_fallthru
      _
  $region399: #{graph_unpool.1} parent=0 // pred_fallthru
    _
  // Predicated region
  $region400: #{graph_unpool.1} parent=0 // pred_check
    _
  $region401: #{graph_unpool.1} parent=0 // pred_check_branch
    %531 = sbr.rel (0) target = $region403
  $region402: #{graph_unpool.1} parent=0 // pred_region
    %s533 = ssub.s32 2, 1
    loop: start=0, step=1, limit=1
    $region404: #{graph_unpool.1} parent=402 // loop_pre_header
      _
    $region405: #{graph_unpool.1} parent=402 // loop_header
      %s535 = sphi 0, %s539
      %p536 = scmp.ge.s32.totalorder %s535, 1
      %s540 = sphi %s525, %s525
      %s541 = sphi %s526, %s526
    $region406: #{graph_unpool.1} parent=402 // loop_header_branch
      %538 = sbr.rel (%p536) target = $region410
    $region407: #{graph_unpool.1} parent=402 // loop_body
      %v542 = vld [vmem:[%s540] sm:%s533]
      %543 = vst [vmem:[%s541] sm:%s533] %v542
    $region408: #{graph_unpool.1} parent=402 // loop_footer
      %s539 = sadd.s32 1, %s535
    $region409: #{graph_unpool.1} parent=402 // loop_footer_branch
      %534 = sbr.rel target = $region405
    $region410: #{graph_unpool.1} parent=402 // loop_exit
      _
  $region403: #{graph_unpool.1} parent=0 // pred_fallthru
    _
  // Predicated region
  $region422: #{graph_unpool.1} parent=0 // pred_check
    _
  $region423: #{graph_unpool.1} parent=0 // pred_check_branch
    %560 = sbr.rel (0) target = $region425
  $region424: #{graph_unpool.1} parent=0 // pred_region
    %561 = vsyncadd %s527, 16
  $region425: #{graph_unpool.1} parent=0 // pred_fallthru
    _
  %s562 = sadd.s32 %s18, 14
  %s563 = sld [smem:[#allocation4 + %s562]]
  %s564 = scalar_lea.vmem %s1, 14
  %s565 = scalar_lea.vmem %s3, %s563
  %s566 = scalar_lea.sflag [#allocation2], 14
  // Predicated region
  $region426: #{graph_unpool.1} parent=0 // pred_check
    _
  $region427: #{graph_unpool.1} parent=0 // pred_check_branch
    %568 = sbr.rel target = $region429
  $region428: #{graph_unpool.1} parent=0 // pred_region
    // Predicated region
    $region441: #{graph_unpool.1} parent=428 // pred_check
      _
    $region442: #{graph_unpool.1} parent=428 // pred_check_branch
      %584 = sbr.rel (0) target = $region444
    $region443: #{graph_unpool.1} parent=428 // pred_region
      %s586 = ssub.s32 2, 1
      loop: start=0, step=1, limit=1
      $region445: #{graph_unpool.1} parent=443 // loop_pre_header
        _
      $region446: #{graph_unpool.1} parent=443 // loop_header
        %s588 = sphi 0, %s592
        %p589 = scmp.ge.s32.totalorder %s588, 1
        %s593 = sphi %s564, %s564
        %s594 = sphi %s565, %s565
      $region447: #{graph_unpool.1} parent=443 // loop_header_branch
        %591 = sbr.rel (%p589) target = $region451
      $region448: #{graph_unpool.1} parent=443 // loop_body
        %v595 = vld [vmem:[%s593] sm:%s586]
        %596 = vst [vmem:[%s594] sm:%s586] %v595
      $region449: #{graph_unpool.1} parent=443 // loop_footer
        %s592 = sadd.s32 1, %s588
      $region450: #{graph_unpool.1} parent=443 // loop_footer_branch
        %587 = sbr.rel target = $region446
      $region451: #{graph_unpool.1} parent=443 // loop_exit
        _
    $region444: #{graph_unpool.1} parent=428 // pred_fallthru
      _
  $region429: #{graph_unpool.1} parent=0 // pred_fallthru
    _
  // Predicated region
  $region430: #{graph_unpool.1} parent=0 // pred_check
    _
  $region431: #{graph_unpool.1} parent=0 // pred_check_branch
    %570 = sbr.rel (0) target = $region433
  $region432: #{graph_unpool.1} parent=0 // pred_region
    %s572 = ssub.s32 2, 1
    loop: start=0, step=1, limit=1
    $region434: #{graph_unpool.1} parent=432 // loop_pre_header
      _
    $region435: #{graph_unpool.1} parent=432 // loop_header
      %s574 = sphi 0, %s578
      %p575 = scmp.ge.s32.totalorder %s574, 1
      %s579 = sphi %s564, %s564
      %s580 = sphi %s565, %s565
    $region436: #{graph_unpool.1} parent=432 // loop_header_branch
      %577 = sbr.rel (%p575) target = $region440
    $region437: #{graph_unpool.1} parent=432 // loop_body
      %v581 = vld [vmem:[%s579] sm:%s572]
      %582 = vst [vmem:[%s580] sm:%s572] %v581
    $region438: #{graph_unpool.1} parent=432 // loop_footer
      %s578 = sadd.s32 1, %s574
    $region439: #{graph_unpool.1} parent=432 // loop_footer_branch
      %573 = sbr.rel target = $region435
    $region440: #{graph_unpool.1} parent=432 // loop_exit
      _
  $region433: #{graph_unpool.1} parent=0 // pred_fallthru
    _
  // Predicated region
  $region452: #{graph_unpool.1} parent=0 // pred_check
    _
  $region453: #{graph_unpool.1} parent=0 // pred_check_branch
    %599 = sbr.rel (0) target = $region455
  $region454: #{graph_unpool.1} parent=0 // pred_region
    %600 = vsyncadd %s566, 16
  $region455: #{graph_unpool.1} parent=0 // pred_fallthru
    _
  %s601 = sadd.s32 %s18, 15
  %s602 = sld [smem:[#allocation4 + %s601]]
  %s603 = scalar_lea.vmem %s1, 15
  %s604 = scalar_lea.vmem %s3, %s602
  %s605 = scalar_lea.sflag [#allocation2], 15
  // Predicated region
  $region456: #{graph_unpool.1} parent=0 // pred_check
    _
  $region457: #{graph_unpool.1} parent=0 // pred_check_branch
    %607 = sbr.rel target = $region459
  $region458: #{graph_unpool.1} parent=0 // pred_region
    // Predicated region
    $region471: #{graph_unpool.1} parent=458 // pred_check
      _
    $region472: #{graph_unpool.1} parent=458 // pred_check_branch
      %623 = sbr.rel (0) target = $region474
    $region473: #{graph_unpool.1} parent=458 // pred_region
      %s625 = ssub.s32 2, 1
      loop: start=0, step=1, limit=1
      $region475: #{graph_unpool.1} parent=473 // loop_pre_header
        _
      $region476: #{graph_unpool.1} parent=473 // loop_header
        %s627 = sphi 0, %s631
        %p628 = scmp.ge.s32.totalorder %s627, 1
        %s632 = sphi %s603, %s603
        %s633 = sphi %s604, %s604
      $region477: #{graph_unpool.1} parent=473 // loop_header_branch
        %630 = sbr.rel (%p628) target = $region481
      $region478: #{graph_unpool.1} parent=473 // loop_body
        %v634 = vld [vmem:[%s632] sm:%s625]
        %635 = vst [vmem:[%s633] sm:%s625] %v634
      $region479: #{graph_unpool.1} parent=473 // loop_footer
        %s631 = sadd.s32 1, %s627
      $region480: #{graph_unpool.1} parent=473 // loop_footer_branch
        %626 = sbr.rel target = $region476
      $region481: #{graph_unpool.1} parent=473 // loop_exit
        _
    $region474: #{graph_unpool.1} parent=458 // pred_fallthru
      _
  $region459: #{graph_unpool.1} parent=0 // pred_fallthru
    _
  // Predicated region
  $region460: #{graph_unpool.1} parent=0 // pred_check
    _
  $region461: #{graph_unpool.1} parent=0 // pred_check_branch
    %609 = sbr.rel (0) target = $region463
  $region462: #{graph_unpool.1} parent=0 // pred_region
    %s611 = ssub.s32 2, 1
    loop: start=0, step=1, limit=1
    $region464: #{graph_unpool.1} parent=462 // loop_pre_header
      _
    $region465: #{graph_unpool.1} parent=462 // loop_header
      %s613 = sphi 0, %s617
      %p614 = scmp.ge.s32.totalorder %s613, 1
      %s618 = sphi %s603, %s603
      %s619 = sphi %s604, %s604
    $region466: #{graph_unpool.1} parent=462 // loop_header_branch
      %616 = sbr.rel (%p614) target = $region470
    $region467: #{graph_unpool.1} parent=462 // loop_body
      %v620 = vld [vmem:[%s618] sm:%s611]
      %621 = vst [vmem:[%s619] sm:%s611] %v620
    $region468: #{graph_unpool.1} parent=462 // loop_footer
      %s617 = sadd.s32 1, %s613
    $region469: #{graph_unpool.1} parent=462 // loop_footer_branch
      %612 = sbr.rel target = $region465
    $region470: #{graph_unpool.1} parent=462 // loop_exit
      _
  $region463: #{graph_unpool.1} parent=0 // pred_fallthru
    _
  // Predicated region
  $region482: #{graph_unpool.1} parent=0 // pred_check
    _
  $region483: #{graph_unpool.1} parent=0 // pred_check_branch
    %638 = sbr.rel (0) target = $region485
  $region484: #{graph_unpool.1} parent=0 // pred_region
    %639 = vsyncadd %s605, 16
  $region485: #{graph_unpool.1} parent=0 // pred_fallthru
    _
  %s640 = smul.u32 1, 1
  %s641 = sshll.u32 %s640, 4
  %642 = dma.done [#allocation2], %s641
  %s643 = sshll.u32 %s640, 4
  %644 = dma.done %s59, %s643
  %s645 = sshll.u32 %s640, 4
  %646 = dma.done %s98, %s645
  %s647 = sshll.u32 %s640, 4
  %648 = dma.done %s137, %s647
  %s649 = sshll.u32 %s640, 4
  %650 = dma.done %s176, %s649
  %s651 = sshll.u32 %s640, 4
  %652 = dma.done %s215, %s651
  %s653 = sshll.u32 %s640, 4
  %654 = dma.done %s254, %s653
  %s655 = sshll.u32 %s640, 4
  %656 = dma.done %s293, %s655
  %s657 = sshll.u32 %s640, 4
  %658 = dma.done %s332, %s657
  %s659 = sshll.u32 %s640, 4
  %660 = dma.done %s371, %s659
  %s661 = sshll.u32 %s640, 4
  %662 = dma.done %s410, %s661
  %s663 = sshll.u32 %s640, 4
  %664 = dma.done %s449, %s663
  %s665 = sshll.u32 %s640, 4
  %666 = dma.done %s488, %s665
  %s667 = sshll.u32 %s640, 4
  %668 = dma.done %s527, %s667
  %s669 = sshll.u32 %s640, 4
  %670 = dma.done %s566, %s669
  %s671 = sshll.u32 %s640, 4
  %672 = dma.done %s605, %s671
  %673 = vsyncmov [#allocation2]
  %s674 = vpop.sfrf %673
  %p675 = scmp.eq.s32.totalorder %s674, 0
  %p676 = pneg %p675
  %678 = shalt.err (%p676)
  %s679 = scalar_lea.sflag [#allocation2], 1
  %680 = vsyncmov %s679
  %s681 = vpop.sfrf %680
  %p682 = scmp.eq.s32.totalorder %s681, 0
  %p683 = pneg %p682
  %685 = shalt.err (%p683)
  %s686 = scalar_lea.sflag [#allocation2], 2
  %687 = vsyncmov %s686
  %s688 = vpop.sfrf %687
  %p689 = scmp.eq.s32.totalorder %s688, 0
  %p690 = pneg %p689
  %692 = shalt.err (%p690)
  %s693 = scalar_lea.sflag [#allocation2], 3
  %694 = vsyncmov %s693
  %s695 = vpop.sfrf %694
  %p696 = scmp.eq.s32.totalorder %s695, 0
  %p697 = pneg %p696
  %699 = shalt.err (%p697)
  %s700 = scalar_lea.sflag [#allocation2], 4
  %701 = vsyncmov %s700
  %s702 = vpop.sfrf %701
  %p703 = scmp.eq.s32.totalorder %s702, 0
  %p704 = pneg %p703
  %706 = shalt.err (%p704)
  %s707 = scalar_lea.sflag [#allocation2], 5
  %708 = vsyncmov %s707
  %s709 = vpop.sfrf %708
  %p710 = scmp.eq.s32.totalorder %s709, 0
  %p711 = pneg %p710
  %713 = shalt.err (%p711)
  %s714 = scalar_lea.sflag [#allocation2], 6
  %715 = vsyncmov %s714
  %s716 = vpop.sfrf %715
  %p717 = scmp.eq.s32.totalorder %s716, 0
  %p718 = pneg %p717
  %720 = shalt.err (%p718)
  %s721 = scalar_lea.sflag [#allocation2], 7
  %722 = vsyncmov %s721
  %s723 = vpop.sfrf %722
  %p724 = scmp.eq.s32.totalorder %s723, 0
  %p725 = pneg %p724
  %727 = shalt.err (%p725)
  %s728 = scalar_lea.sflag [#allocation2], 8
  %729 = vsyncmov %s728
  %s730 = vpop.sfrf %729
  %p731 = scmp.eq.s32.totalorder %s730, 0
  %p732 = pneg %p731
  %734 = shalt.err (%p732)
  %s735 = scalar_lea.sflag [#allocation2], 9
  %736 = vsyncmov %s735
  %s737 = vpop.sfrf %736
  %p738 = scmp.eq.s32.totalorder %s737, 0
  %p739 = pneg %p738
  %741 = shalt.err (%p739)
  %s742 = scalar_lea.sflag [#allocation2], 10
  %743 = vsyncmov %s742
  %s744 = vpop.sfrf %743
  %p745 = scmp.eq.s32.totalorder %s744, 0
  %p746 = pneg %p745
  %748 = shalt.err (%p746)
  %s749 = scalar_lea.sflag [#allocation2], 11
  %750 = vsyncmov %s749
  %s751 = vpop.sfrf %750
  %p752 = scmp.eq.s32.totalorder %s751, 0
  %p753 = pneg %p752
  %755 = shalt.err (%p753)
  %s756 = scalar_lea.sflag [#allocation2], 12
  %757 = vsyncmov %s756
  %s758 = vpop.sfrf %757
  %p759 = scmp.eq.s32.totalorder %s758, 0
  %p760 = pneg %p759
  %762 = shalt.err (%p760)
  %s763 = scalar_lea.sflag [#allocation2], 13
  %764 = vsyncmov %s763
  %s765 = vpop.sfrf %764
  %p766 = scmp.eq.s32.totalorder %s765, 0
  %p767 = pneg %p766
  %769 = shalt.err (%p767)
  %s770 = scalar_lea.sflag [#allocation2], 14
  %771 = vsyncmov %s770
  %s772 = vpop.sfrf %771
  %p773 = scmp.eq.s32.totalorder %s772, 0
  %p774 = pneg %p773
  %776 = shalt.err (%p774)
  %s777 = scalar_lea.sflag [#allocation2], 15
  %778 = vsyncmov %s777
  %s779 = vpop.sfrf %778
  %p780 = scmp.eq.s32.totalorder %s779, 0
  %p781 = pneg %p780
  %783 = shalt.err (%p781)

</llo_original>
